<compile_context>
chip_gen: v5e
topology: v5e:2x2
jax: 0.10.0
libtpu: 0.0.40
codegen_flags: <defaults>
</compile_context>

<pallas_src>
import jax
import jax.numpy as jnp
from jax.experimental import pallas as pl
from jax.experimental.pallas import tpu as pltpu

CP = 128                      # lane width for hidden channels (one vreg row)
MATMUL_DTYPE = jnp.bfloat16   # MXU operand dtype; accumulation stays f32


def _next_pow2(n):
    p = 1
    while p < n:
        p *= 2
    return p


def _round_up(n, m):
    return ((n + m - 1) // m) * m


def _conv_pack_meta(c_in, K, cp=CP):
    """Lane-compact im2col: several taps share one 128-lane contraction chunk."""
    cpad = min(_next_pow2(max(int(c_in), 1)), cp)   # lane slot per tap (divides 128)
    tpc = cp // cpad                                # taps per 128-lane chunk
    n_chunks = -(-K // tpc)                         # ceil(K / tpc)
    return cpad, tpc, n_chunks


# ---------------------------------------------------------------------------
# Fused kernel: embed + NaN mask -> TemporalConvNet -> tfd linear
# ---------------------------------------------------------------------------
def _make_fused_kernel(*, K, dilations, has_ds, pack1, pack2, B_tile, L, cp, pad_rows):
    n_layers = len(dilations)
    M = B_tile * L

    def kernel(*refs):
        it = iter(refs)
        x_ref = next(it)
        ew, eb = next(it), next(it)
        layer_refs = []
        for i in range(n_layers):
            w1, b1, w2, b2 = next(it), next(it), next(it), next(it)
            wd = bd = None
            if has_ds[i]:
                wd, bd = next(it), next(it)
            layer_refs.append((w1, b1, w2, b2, wd, bd))
        tw, tb = next(it), next(it)
        o_ref = next(it)
        hbuf = next(it)                     # VMEM (B_tile, pad_rows + L, cp) f32

        def mm3(a3, w_ref, b_ref):
            """(B_tile, L, W) @ (W, cp) -> (B_tile, L, cp); bf16 MXU, f32 accum."""
            w = a3.shape[-1]
            a2 = a3.reshape(M, w).astype(MATMUL_DTYPE)      # layout-free (L % 8 == 0)
            r = jnp.dot(a2, w_ref[...], preferred_element_type=jnp.float32)
            r = r + b_ref[...]                              # f32 bias add (VPU)
            return r.reshape(B_tile, L, cp)

        def causal_conv(h3, w_ref, b_ref, dil, pack):
            """Causal dilated conv as one matmul on a lane-compacted im2col block."""
            cpad, tpc, n_chunks = pack
            # Refresh the im2col source; halo rows [0, pad_rows) stay zero.
            hbuf[:, pad_rows:pad_rows + L, :] = h3
            chunks = []
            for c in range(n_chunks):
                acc = None
                for t in range(tpc):
                    k = c * tpc + t
                    if k >= K:
                        break
                    s = (K - 1 - k) * dil                   # causal shift of tap k
                    tap = h3 if s == 0 else hbuf[:, pad_rows - s:pad_rows - s + L, :]
                    if t:
                        # real channels [0, C_in) -> lanes [t*cpad, t*cpad+C_in);
                        # wrapped lanes are zero (zero-lane invariant), XLU slot.
                        tap = pltpu.roll(tap, shift=t * cpad, axis=2)
                    acc = tap if acc is None else acc + tap
                chunks.append(acc)
            tap3 = chunks[0] if n_chunks == 1 else jnp.concatenate(chunks, axis=-1)
            return mm3(tap3, w_ref, b_ref)

        # Zero the causal halo once per grid step (never rewritten afterwards).
        hbuf[:, 0:pad_rows, :] = jnp.zeros((B_tile, pad_rows, cp), jnp.float32)

        # ---- enc_embedding + NaN masking (x[~nan]=0; y = xW+b; y[~nan]=0) ----
        x = x_ref[...].astype(jnp.float32)                  # (B_tile, L, Cin)
        valid = jnp.logical_not(jnp.any(jnp.isnan(x), axis=-1, keepdims=True))
        x = jnp.where(valid, x, 0.0)
        h = mm3(x, ew, eb)                                  # contraction over Cin
        h = jnp.where(valid, h, 0.0)
        # TODO(synk): mask_flag=True binomial masking path not implemented
        # (default forward uses mask_flag=False); dropout = identity (eval mode).

        # ---- TemporalConvNet: stack of causal dilated TemporalBlocks ----
        for i, (w1, b1, w2, b2, wd, bd) in enumerate(layer_refs):
            d = dilations[i]
            h1 = jnp.maximum(causal_conv(h, w1, b1, d, pack1[i]), 0.0)   # relu(conv1)
            res = mm3(h, wd, bd) if wd is not None else h                # 1x1 downsample
            h2 = jnp.maximum(causal_conv(h1, w2, b2, d, pack2[i]), 0.0)  # relu(conv2)
            h = jnp.maximum(h2 + res, 0.0)                               # relu(out+res)

        # ---- tfd Linear (lane-dense 128-wide store) ----
        o_ref[...] = mm3(h, tw, tb).astype(o_ref.dtype)

    return kernel


# ---------------------------------------------------------------------------
# Parameter preparation: bf16 weights, compact im2col packing, lane padding
# ---------------------------------------------------------------------------
def prepare_params(params, K, cp=CP):
    wdt = MATMUL_DTYPE

    def pad_mat(w, rows=cp):
        o = jnp.zeros((rows, cp), jnp.float32)
        o = o.at[:w.shape[0], :w.shape[1]].set(w.astype(jnp.float32))
        return o.astype(wdt)

    def pad_bias(b):
        o = jnp.zeros((1, cp), jnp.float32)
        return o.at[0, :b.shape[0]].set(b.astype(jnp.float32))

    def pack_conv(w):                                  # (K, Cin, Cout) -> (n_chunks*cp, cp)
        Kk, c_in, c_out = w.shape
        assert c_in <= cp and c_out <= cp
        cpad, tpc, n_chunks = _conv_pack_meta(c_in, Kk, cp)
        o = jnp.zeros((n_chunks * cp, cp), jnp.float32)
        for k in range(Kk):
            chunk, t = divmod(k, tpc)
            r0 = chunk * cp + t * cpad
            o = o.at[r0:r0 + c_in, :c_out].set(w[k].astype(jnp.float32))
        return o.astype(wdt), (cpad, tpc, n_chunks)

    in_size, hid = params["embed_w"].shape
    assert in_size <= cp and hid <= cp
    pp = {
        "embed_w": pad_mat(params["embed_w"], rows=_round_up(in_size, 8)),
        "embed_b": pad_bias(params["embed_b"]),
        "tfd_w": pad_mat(params["tfd_w"]),
        "tfd_b": pad_bias(params["tfd_b"]),
        "layers": [],
    }
    dilations, has_ds, pack1, pack2 = [], [], [], []
    for lp in params["layers"]:
        w1p, m1 = pack_conv(lp["w1"])
        w2p, m2 = pack_conv(lp["w2"])
        plp = {"w1": w1p, "b1": pad_bias(lp["b1"]),
               "w2": w2p, "b2": pad_bias(lp["b2"])}
        if "wd" in lp:
            plp["wd"] = pad_mat(lp["wd"])
            plp["bd"] = pad_bias(lp["bd"])
        pp["layers"].append(plp)
        dilations.append(int(lp["dilation"]))
        has_ds.append("wd" in lp)
        pack1.append(m1)
        pack2.append(m2)
    cfg = dict(K=K, cp=cp,
               dilations=tuple(dilations), has_ds=tuple(has_ds),
               pack1=tuple(pack1), pack2=tuple(pack2),
               out_channels=int(params["tfd_w"].shape[1]))
    return pp, cfg


# ---------------------------------------------------------------------------
# Tiling / VMEM heuristics
# ---------------------------------------------------------------------------
def _pick_vmem_limit_bytes():
    # Per-generation budget: ~75% of physical VMEM (v7x 64 MiB/TC -> 48 MiB,
    # v5e/v6e 128 MiB -> capped at 96 MiB), never below the 32 MiB default.
    try:
        phys = int(pltpu.get_tpu_info().vmem_capacity_bytes)
    except Exception:
        phys = 64 * 1024 * 1024
    return int(min(96 * 1024 * 1024, max(32 * 1024 * 1024, int(phys * 0.75))))


def _pick_b_tile(B, L):
    # Batch samples into the matmul M dimension; keep grid >= 2 when possible
    # so the "parallel" batch axis can feed both v7x TensorCores.
    if L % 8 != 0:                       # keep the in-kernel flatten layout-free
        return 1
    max_rows = 1024                      # B_tile * L activation rows resident in VMEM
    divs = [d for d in range(1, B + 1) if B % d == 0 and d * L <= max_rows]
    if not divs:
        return 1
    bt = max(divs)
    if B // bt < 2:
        for d in sorted(divs, reverse=True):
            if B // d >= 2:
                bt = d
                break
    return bt


# ---------------------------------------------------------------------------
# Jitted forward: one pallas_call for the whole network, gridded over batch
# ---------------------------------------------------------------------------
def make_tcn_forward(cfg):
    K, cp = cfg["K"], cfg["cp"]
    dilations, has_ds = cfg["dilations"], cfg["has_ds"]
    pack1, pack2 = cfg["pack1"], cfg["pack2"]
    out_ch = cfg["out_channels"]
    max_pad = max((K - 1) * d for d in dilations)
    pad_rows = max(8, _round_up(max_pad, 8))          # sublane-aligned causal halo
    vmem_limit = _pick_vmem_limit_bytes()

    @jax.jit
    def forward(pp, x):
        B, L, _ = x.shape
        c_in_p = int(pp["embed_w"].shape[0])           # input channels rounded to 8
        if x.shape[-1] != c_in_p:                      # tiny pad (<=7 lanes), not 128
            x = jnp.pad(x, ((0, 0), (0, 0), (0, c_in_p - x.shape[-1])))
        b_tile = _pick_b_tile(B, L)
        grid = (B // b_tile,)

        def const_spec(a):                             # full-array block, fixed index
            return pl.BlockSpec(tuple(int(s) for s in a.shape), lambda i: (0, 0))

        args = [x, pp["embed_w"], pp["embed_b"]]
        in_specs = [
            pl.BlockSpec((b_tile, L, c_in_p), lambda i: (i, 0, 0)),  # raw input
            const_spec(pp["embed_w"]), const_spec(pp["embed_b"]),
        ]
        flops = 2 * B * L * c_in_p * cp
        for li, lp in enumerate(pp["layers"]):
            args += [lp["w1"], lp["b1"], lp["w2"], lp["b2"]]
            in_specs += [const_spec(lp["w1"]), const_spec(lp["b1"]),
                         const_spec(lp["w2"]), const_spec(lp["b2"])]
            flops += 2 * B * L * (pack1[li][2] + pack2[li][2]) * cp * cp
            if has_ds[li]:
                args += [lp["wd"], lp["bd"]]
                in_specs += [const_spec(lp["wd"]), const_spec(lp["bd"])]
                flops += 2 * B * L * cp * cp
        args += [pp["tfd_w"], pp["tfd_b"]]
        in_specs += [const_spec(pp["tfd_w"]), const_spec(pp["tfd_b"])]
        flops += 2 * B * L * cp * cp

        bytes_accessed = (int(x.size) * x.dtype.itemsize
                          + sum(int(a.size) * a.dtype.itemsize for a in args[1:])
                          + B * L * cp * x.dtype.itemsize)

        kernel = _make_fused_kernel(
            K=K, dilations=dilations, has_ds=has_ds, pack1=pack1, pack2=pack2,
            B_tile=b_tile, L=L, cp=cp, pad_rows=pad_rows)

        out = pl.pallas_call(
            kernel,
            out_shape=jax.ShapeDtypeStruct((B, L, cp), x.dtype),
            grid=grid,
            in_specs=in_specs,
            out_specs=pl.BlockSpec((b_tile, L, cp), lambda i: (i, 0, 0)),
            scratch_shapes=[pltpu.VMEM((b_tile, pad_rows + L, cp), jnp.float32)],
            compiler_params=pltpu.CompilerParams(
                dimension_semantics=("parallel",),
                vmem_limit_bytes=vmem_limit),
            cost_estimate=pl.CostEstimate(
                flops=int(flops), transcendentals=0,
                bytes_accessed=int(bytes_accessed)),
        )(*args)
        return out[..., :out_ch]                       # drop lane padding
    return forward


# ---------------------------------------------------------------------------
# Reference-layout (unpadded) parameter init, matching the PyTorch structure
# ---------------------------------------------------------------------------
def init_params(key, input_size, hidden, represent, e_layer, K):
    def nrm(k, shape, scale=0.05):
        return scale * jax.random.normal(k, shape, jnp.float32)

    keys = iter(jax.random.split(key, 64))
    params = {
        "embed_w": 0.01 * jax.random.normal(next(keys), (input_size, hidden), jnp.float32),
        "embed_b": nrm(next(keys), (hidden,)),
        "layers": [],
    }
    chans = [hidden] * e_layer + [represent]
    for i, out_ch in enumerate(chans):
        in_ch = hidden if i == 0 else chans[i - 1]
        lp = {
            "dilation": 2 ** i,
            "w1": nrm(next(keys), (K, in_ch, out_ch)),
            "b1": nrm(next(keys), (out_ch,)),
            "w2": nrm(next(keys), (K, out_ch, out_ch)),
            "b2": nrm(next(keys), (out_ch,)),
        }
        if in_ch != out_ch:                           # residual 1x1 conv (downsample)
            lp["wd"] = nrm(next(keys), (in_ch, out_ch))
            lp["bd"] = nrm(next(keys), (out_ch,))
        params["layers"].append(lp)
    params["tfd_w"] = nrm(next(keys), (represent, represent))
    params["tfd_b"] = nrm(next(keys), (represent,))
    return params


# ---------------------------------------------------------------------------
# Pure-JAX reference (f32, unpadded) for correctness checking
# ---------------------------------------------------------------------------
def tcn_reference(params, x, K):
    nan_any = jnp.any(jnp.isnan(x), axis=-1, keepdims=True)
    x = jnp.where(nan_any, 0.0, x)
    h = x @ params["embed_w"] + params["embed_b"]
    h = jnp.where(nan_any, 0.0, h)
    L = x.shape[1]

    def cconv(a, w, b, d):
        P = (K - 1) * d
        ap = jnp.pad(a, ((0, 0), (P, 0), (0, 0)))
        acc = 0.0
        for k in range(K):
            s = (K - 1 - k) * d
            acc = acc + jnp.einsum("blc,co->blo", ap[:, P - s:P - s + L, :], w[k])
        return acc + b

    for lp in params["layers"]:
        d = int(lp["dilation"])
        h1 = jax.nn.relu(cconv(h, lp["w1"], lp["b1"], d))
        res = (h @ lp["wd"] + lp["bd"]) if "wd" in lp else h
        h2 = jax.nn.relu(cconv(h1, lp["w2"], lp["b2"], d))
        h = jax.nn.relu(h2 + res)
    return h @ params["tfd_w"] + params["tfd_b"]


if __name__ == "__main__":
    B, L = 8, 16              # batch, seq_len
    input_size = 8
    hidden_size = 32
    represent_size = 16
    e_layer = 2
    kernel_size = 3

    key = jax.random.PRNGKey(0)
    kx, kp = jax.random.split(key)
    x = jax.random.normal(kx, (B, L, input_size), jnp.float32)
    # inject NaNs to exercise the nan-mask path
    x = x.at[0, 3, 2].set(jnp.nan)
    x = x.at[1, 7, 0].set(jnp.nan)
    x = x.at[5, 0, 4].set(jnp.nan)

    params = init_params(kp, input_size, hidden_size, represent_size, e_layer, kernel_size)
    pparams, cfg = prepare_params(params, kernel_size)
    tcn_forward = make_tcn_forward(cfg)

    out = jax.block_until_ready(tcn_forward(pparams, x))

    assert out.shape == (B, L, represent_size), out.shape
    assert bool(jnp.all(jnp.isfinite(out))), "NaN leaked through masking"

    ref = tcn_reference(params, x, kernel_size)
    err = float(jnp.max(jnp.abs(out - ref)))
    assert err < 3e-2, f"mismatch vs pure-JAX reference: max abs err {err}"
    print("KERNEL_OK")
</pallas_src>

<mosaic_0001>
module attributes {stable_mosaic.version = 11 : i64} {
  func.func @kernel(%arg0: i32, %arg1: memref<4x16x8xf32, #tpu.memory_space<vmem>>, %arg2: memref<8x128xbf16, #tpu.memory_space<vmem>>, %arg3: memref<1x128xf32, #tpu.memory_space<vmem>>, %arg4: memref<128x128xbf16, #tpu.memory_space<vmem>>, %arg5: memref<1x128xf32, #tpu.memory_space<vmem>>, %arg6: memref<128x128xbf16, #tpu.memory_space<vmem>>, %arg7: memref<1x128xf32, #tpu.memory_space<vmem>>, %arg8: memref<128x128xbf16, #tpu.memory_space<vmem>>, %arg9: memref<1x128xf32, #tpu.memory_space<vmem>>, %arg10: memref<128x128xbf16, #tpu.memory_space<vmem>>, %arg11: memref<1x128xf32, #tpu.memory_space<vmem>>, %arg12: memref<128x128xbf16, #tpu.memory_space<vmem>>, %arg13: memref<1x128xf32, #tpu.memory_space<vmem>>, %arg14: memref<128x128xbf16, #tpu.memory_space<vmem>>, %arg15: memref<1x128xf32, #tpu.memory_space<vmem>>, %arg16: memref<128x128xbf16, #tpu.memory_space<vmem>>, %arg17: memref<1x128xf32, #tpu.memory_space<vmem>>, %arg18: memref<128x128xbf16, #tpu.memory_space<vmem>>, %arg19: memref<1x128xf32, #tpu.memory_space<vmem>>, %arg20: memref<4x16x128xf32, #tpu.memory_space<vmem>>, %arg21: memref<4x24x128xf32, #tpu.memory_space<vmem>>) attributes {dimension_semantics = [#tpu.dimension_semantics<parallel>], iteration_bounds = array<i64: 2>, scalar_prefetch = 0 : i64, scratch_operands = 1 : i64, tpu.core_type = #tpu.core_type<tc>, window_params = [{transform_indices = @transform_0, window_bounds = array<i64: 4, 16, 8>}, {pipeline_mode = #tpu.pipeline_mode<synchronous>, transform_indices = @transform_1, window_bounds = array<i64: 8, 128>}, {pipeline_mode = #tpu.pipeline_mode<synchronous>, transform_indices = @transform_2, window_bounds = array<i64: 1, 128>}, {pipeline_mode = #tpu.pipeline_mode<synchronous>, transform_indices = @transform_3, window_bounds = array<i64: 128, 128>}, {pipeline_mode = #tpu.pipeline_mode<synchronous>, transform_indices = @transform_4, window_bounds = array<i64: 1, 128>}, {pipeline_mode = #tpu.pipeline_mode<synchronous>, transform_indices = @transform_5, window_bounds = array<i64: 128, 128>}, {pipeline_mode = #tpu.pipeline_mode<synchronous>, transform_indices = @transform_6, window_bounds = array<i64: 1, 128>}, {pipeline_mode = #tpu.pipeline_mode<synchronous>, transform_indices = @transform_7, window_bounds = array<i64: 128, 128>}, {pipeline_mode = #tpu.pipeline_mode<synchronous>, transform_indices = @transform_8, window_bounds = array<i64: 1, 128>}, {pipeline_mode = #tpu.pipeline_mode<synchronous>, transform_indices = @transform_9, window_bounds = array<i64: 128, 128>}, {pipeline_mode = #tpu.pipeline_mode<synchronous>, transform_indices = @transform_10, window_bounds = array<i64: 1, 128>}, {pipeline_mode = #tpu.pipeline_mode<synchronous>, transform_indices = @transform_11, window_bounds = array<i64: 128, 128>}, {pipeline_mode = #tpu.pipeline_mode<synchronous>, transform_indices = @transform_12, window_bounds = array<i64: 1, 128>}, {pipeline_mode = #tpu.pipeline_mode<synchronous>, transform_indices = @transform_13, window_bounds = array<i64: 128, 128>}, {pipeline_mode = #tpu.pipeline_mode<synchronous>, transform_indices = @transform_14, window_bounds = array<i64: 1, 128>}, {pipeline_mode = #tpu.pipeline_mode<synchronous>, transform_indices = @transform_15, window_bounds = array<i64: 128, 128>}, {pipeline_mode = #tpu.pipeline_mode<synchronous>, transform_indices = @transform_16, window_bounds = array<i64: 1, 128>}, {pipeline_mode = #tpu.pipeline_mode<synchronous>, transform_indices = @transform_17, window_bounds = array<i64: 128, 128>}, {pipeline_mode = #tpu.pipeline_mode<synchronous>, transform_indices = @transform_18, window_bounds = array<i64: 1, 128>}, {transform_indices = @transform_19, window_bounds = array<i64: 4, 16, 128>}]} {
    %cst = arith.constant 0.000000e+00 : f32
    %0 = vector.broadcast %cst : f32 to vector<4x8x128xf32>
    %c0 = arith.constant 0 : index
    %c0_0 = arith.constant 0 : index
    %c0_1 = arith.constant 0 : index
    %1 = vector.load %arg21[%c0, %c0_0, %c0_1] : memref<4x24x128xf32, #tpu.memory_space<vmem>>, vector<4x8x128xf32>
    tpu.vector_store %arg21[%c0, %c0_0, %c0_1], %0 {strides = array<i32>} : memref<4x24x128xf32, #tpu.memory_space<vmem>>, vector<4x8x128xf32>,
    %c0_2 = arith.constant 0 : index
    %c0_3 = arith.constant 0 : index
    %c0_4 = arith.constant 0 : index
    %2 = vector.load %arg1[%c0_2, %c0_3, %c0_4] : memref<4x16x8xf32, #tpu.memory_space<vmem>>, vector<4x16x8xf32>
    %3 = arith.cmpf one, %2, %2 : vector<4x16x8xf32>
    %cst_5 = arith.constant 1.000000e+00 : f32
    %cst_6 = arith.constant 0.000000e+00 : f32
    %4 = vector.broadcast %cst_5 : f32 to vector<4x16x8xf32>
    %5 = vector.broadcast %cst_6 : f32 to vector<4x16x8xf32>
    %6 = arith.select %3, %4, %5 : vector<4x16x8xi1>, vector<4x16x8xf32>
    %cst_7 = arith.constant dense<0xFF800000> : vector<4x16xf32>
    %7 = vector.multi_reduction <maximumf>, %6, %cst_7 [2] : vector<4x16x8xf32> to vector<4x16xf32>
    %cst_8 = arith.constant 0.000000e+00 : f32
    %8 = vector.broadcast %cst_8 : f32 to vector<4x16xf32>
    %9 = arith.cmpf ogt, %7, %8 : vector<4x16xf32>
    %10 = vector.shape_cast %9 : vector<4x16xi1> to vector<4x16x1xi1>
    %cst_9 = arith.constant dense<true> : vector<4x16x1xi1>
    %11 = arith.xori %10, %cst_9 : vector<4x16x1xi1>
    %cst_10 = arith.constant 0.000000e+00 : f32
    %12 = vector.shape_cast %11 : vector<4x16x1xi1> to vector<4x16x1xi1>
    %13 = vector.broadcast %12 : vector<4x16x1xi1> to vector<4x16x8xi1>
    %14 = vector.broadcast %cst_10 : f32 to vector<4x16x8xf32>
    %15 = arith.select %13, %2, %14 : vector<4x16x8xi1>, vector<4x16x8xf32>
    %16 = vector.shape_cast %15 : vector<4x16x8xf32> to vector<64x8xf32>
    %17 = arith.truncf %16 : vector<64x8xf32> to vector<64x8xbf16>
    %c0_11 = arith.constant 0 : index
    %c0_12 = arith.constant 0 : index
    %18 = vector.load %arg2[%c0_11, %c0_12] : memref<8x128xbf16, #tpu.memory_space<vmem>>, vector<8x128xbf16>
    %cst_13 = arith.constant dense<0.000000e+00> : vector<64x128xf32>
    %19 = tpu.matmul %17, %18, %cst_13 {dimension_numbers = #tpu.dot_dimension_numbers<[1], [0], [0], [1], [0, 0, 1, 1], [], []>} : vector<64x8xbf16>, vector<8x128xbf16>, vector<64x128xf32> -> vector<64x128xf32>
    %c0_14 = arith.constant 0 : index
    %c0_15 = arith.constant 0 : index
    %20 = vector.load %arg3[%c0_14, %c0_15] : memref<1x128xf32, #tpu.memory_space<vmem>>, vector<1x128xf32>
    %21 = vector.broadcast %20 : vector<1x128xf32> to vector<64x128xf32>
    %22 = arith.addf %19, %21 : vector<64x128xf32>
    %23 = vector.shape_cast %22 : vector<64x128xf32> to vector<4x16x128xf32>
    %cst_16 = arith.constant 0.000000e+00 : f32
    %24 = vector.shape_cast %11 : vector<4x16x1xi1> to vector<4x16x1xi1>
    %25 = vector.broadcast %24 : vector<4x16x1xi1> to vector<4x16x128xi1>
    %26 = vector.broadcast %cst_16 : f32 to vector<4x16x128xf32>
    %27 = arith.select %25, %23, %26 : vector<4x16x128xi1>, vector<4x16x128xf32>
    %c0_17 = arith.constant 0 : index
    %c8 = arith.constant 8 : index
    %c0_18 = arith.constant 0 : index
    %28 = vector.load %arg21[%c0_17, %c8, %c0_18] : memref<4x24x128xf32, #tpu.memory_space<vmem>>, vector<4x16x128xf32>
    tpu.vector_store %arg21[%c0_17, %c8, %c0_18], %27 {strides = array<i32>} : memref<4x24x128xf32, #tpu.memory_space<vmem>>, vector<4x16x128xf32>,
    %c0_19 = arith.constant 0 : index
    %c6 = arith.constant 6 : index
    %c0_20 = arith.constant 0 : index
    %29 = vector.load %arg21[%c0_19, %c6, %c0_20] : memref<4x24x128xf32, #tpu.memory_space<vmem>>, vector<4x16x128xf32>
    %c0_21 = arith.constant 0 : index
    %c7 = arith.constant 7 : index
    %c0_22 = arith.constant 0 : index
    %30 = vector.load %arg21[%c0_21, %c7, %c0_22] : memref<4x24x128xf32, #tpu.memory_space<vmem>>, vector<4x16x128xf32>
    %c32_i32 = arith.constant 32 : i32
    %31 = tpu.dynamic_rotate %30 by %c32_i32 dim 2 : vector<4x16x128xf32>, i32 -> vector<4x16x128xf32>
    %32 = arith.addf %29, %31 : vector<4x16x128xf32>
    %c64_i32 = arith.constant 64 : i32
    %33 = tpu.dynamic_rotate %27 by %c64_i32 dim 2 : vector<4x16x128xf32>, i32 -> vector<4x16x128xf32>
    %34 = arith.addf %32, %33 : vector<4x16x128xf32>
    %35 = vector.shape_cast %34 : vector<4x16x128xf32> to vector<64x128xf32>
    %36 = arith.truncf %35 : vector<64x128xf32> to vector<64x128xbf16>
    %c0_23 = arith.constant 0 : index
    %c0_24 = arith.constant 0 : index
    %37 = vector.load %arg4[%c0_23, %c0_24] : memref<128x128xbf16, #tpu.memory_space<vmem>>, vector<128x128xbf16>
    %cst_25 = arith.constant dense<0.000000e+00> : vector<64x128xf32>
    %38 = tpu.matmul %36, %37, %cst_25 {dimension_numbers = #tpu.dot_dimension_numbers<[1], [0], [0], [1], [0, 0, 1, 1], [], []>} : vector<64x128xbf16>, vector<128x128xbf16>, vector<64x128xf32> -> vector<64x128xf32>
    %c0_26 = arith.constant 0 : index
    %c0_27 = arith.constant 0 : index
    %39 = vector.load %arg5[%c0_26, %c0_27] : memref<1x128xf32, #tpu.memory_space<vmem>>, vector<1x128xf32>
    %40 = vector.broadcast %39 : vector<1x128xf32> to vector<64x128xf32>
    %41 = arith.addf %38, %40 : vector<64x128xf32>
    %42 = vector.shape_cast %41 : vector<64x128xf32> to vector<4x16x128xf32>
    %cst_28 = arith.constant 0.000000e+00 : f32
    %43 = vector.broadcast %cst_28 : f32 to vector<4x16x128xf32>
    %44 = arith.maximumf %42, %43 : vector<4x16x128xf32>
    %c0_29 = arith.constant 0 : index
    %c8_30 = arith.constant 8 : index
    %c0_31 = arith.constant 0 : index
    %45 = vector.load %arg21[%c0_29, %c8_30, %c0_31] : memref<4x24x128xf32, #tpu.memory_space<vmem>>, vector<4x16x128xf32>
    tpu.vector_store %arg21[%c0_29, %c8_30, %c0_31], %44 {strides = array<i32>} : memref<4x24x128xf32, #tpu.memory_space<vmem>>, vector<4x16x128xf32>,
    %c0_32 = arith.constant 0 : index
    %c6_33 = arith.constant 6 : index
    %c0_34 = arith.constant 0 : index
    %46 = vector.load %arg21[%c0_32, %c6_33, %c0_34] : memref<4x24x128xf32, #tpu.memory_space<vmem>>, vector<4x16x128xf32>
    %c0_35 = arith.constant 0 : index
    %c7_36 = arith.constant 7 : index
    %c0_37 = arith.constant 0 : index
    %47 = vector.load %arg21[%c0_35, %c7_36, %c0_37] : memref<4x24x128xf32, #tpu.memory_space<vmem>>, vector<4x16x128xf32>
    %c32_i32_38 = arith.constant 32 : i32
    %48 = tpu.dynamic_rotate %47 by %c32_i32_38 dim 2 : vector<4x16x128xf32>, i32 -> vector<4x16x128xf32>
    %49 = arith.addf %46, %48 : vector<4x16x128xf32>
    %c64_i32_39 = arith.constant 64 : i32
    %50 = tpu.dynamic_rotate %44 by %c64_i32_39 dim 2 : vector<4x16x128xf32>, i32 -> vector<4x16x128xf32>
    %51 = arith.addf %49, %50 : vector<4x16x128xf32>
    %52 = vector.shape_cast %51 : vector<4x16x128xf32> to vector<64x128xf32>
    %53 = arith.truncf %52 : vector<64x128xf32> to vector<64x128xbf16>
    %c0_40 = arith.constant 0 : index
    %c0_41 = arith.constant 0 : index
    %54 = vector.load %arg6[%c0_40, %c0_41] : memref<128x128xbf16, #tpu.memory_space<vmem>>, vector<128x128xbf16>
    %cst_42 = arith.constant dense<0.000000e+00> : vector<64x128xf32>
    %55 = tpu.matmul %53, %54, %cst_42 {dimension_numbers = #tpu.dot_dimension_numbers<[1], [0], [0], [1], [0, 0, 1, 1], [], []>} : vector<64x128xbf16>, vector<128x128xbf16>, vector<64x128xf32> -> vector<64x128xf32>
    %c0_43 = arith.constant 0 : index
    %c0_44 = arith.constant 0 : index
    %56 = vector.load %arg7[%c0_43, %c0_44] : memref<1x128xf32, #tpu.memory_space<vmem>>, vector<1x128xf32>
    %57 = vector.broadcast %56 : vector<1x128xf32> to vector<64x128xf32>
    %58 = arith.addf %55, %57 : vector<64x128xf32>
    %59 = vector.shape_cast %58 : vector<64x128xf32> to vector<4x16x128xf32>
    %cst_45 = arith.constant 0.000000e+00 : f32
    %60 = vector.broadcast %cst_45 : f32 to vector<4x16x128xf32>
    %61 = arith.maximumf %59, %60 : vector<4x16x128xf32>
    %62 = arith.addf %61, %27 : vector<4x16x128xf32>
    %cst_46 = arith.constant 0.000000e+00 : f32
    %63 = vector.broadcast %cst_46 : f32 to vector<4x16x128xf32>
    %64 = arith.maximumf %62, %63 : vector<4x16x128xf32>
    %c0_47 = arith.constant 0 : index
    %c8_48 = arith.constant 8 : index
    %c0_49 = arith.constant 0 : index
    %65 = vector.load %arg21[%c0_47, %c8_48, %c0_49] : memref<4x24x128xf32, #tpu.memory_space<vmem>>, vector<4x16x128xf32>
    tpu.vector_store %arg21[%c0_47, %c8_48, %c0_49], %64 {strides = array<i32>} : memref<4x24x128xf32, #tpu.memory_space<vmem>>, vector<4x16x128xf32>,
    %c0_50 = arith.constant 0 : index
    %c4 = arith.constant 4 : index
    %c0_51 = arith.constant 0 : index
    %66 = vector.load %arg21[%c0_50, %c4, %c0_51] : memref<4x24x128xf32, #tpu.memory_space<vmem>>, vector<4x16x128xf32>
    %c0_52 = arith.constant 0 : index
    %c6_53 = arith.constant 6 : index
    %c0_54 = arith.constant 0 : index
    %67 = vector.load %arg21[%c0_52, %c6_53, %c0_54] : memref<4x24x128xf32, #tpu.memory_space<vmem>>, vector<4x16x128xf32>
    %c32_i32_55 = arith.constant 32 : i32
    %68 = tpu.dynamic_rotate %67 by %c32_i32_55 dim 2 : vector<4x16x128xf32>, i32 -> vector<4x16x128xf32>
    %69 = arith.addf %66, %68 : vector<4x16x128xf32>
    %c64_i32_56 = arith.constant 64 : i32
    %70 = tpu.dynamic_rotate %64 by %c64_i32_56 dim 2 : vector<4x16x128xf32>, i32 -> vector<4x16x128xf32>
    %71 = arith.addf %69, %70 : vector<4x16x128xf32>
    %72 = vector.shape_cast %71 : vector<4x16x128xf32> to vector<64x128xf32>
    %73 = arith.truncf %72 : vector<64x128xf32> to vector<64x128xbf16>
    %c0_57 = arith.constant 0 : index
    %c0_58 = arith.constant 0 : index
    %74 = vector.load %arg8[%c0_57, %c0_58] : memref<128x128xbf16, #tpu.memory_space<vmem>>, vector<128x128xbf16>
    %cst_59 = arith.constant dense<0.000000e+00> : vector<64x128xf32>
    %75 = tpu.matmul %73, %74, %cst_59 {dimension_numbers = #tpu.dot_dimension_numbers<[1], [0], [0], [1], [0, 0, 1, 1], [], []>} : vector<64x128xbf16>, vector<128x128xbf16>, vector<64x128xf32> -> vector<64x128xf32>
    %c0_60 = arith.constant 0 : index
    %c0_61 = arith.constant 0 : index
    %76 = vector.load %arg9[%c0_60, %c0_61] : memref<1x128xf32, #tpu.memory_space<vmem>>, vector<1x128xf32>
    %77 = vector.broadcast %76 : vector<1x128xf32> to vector<64x128xf32>
    %78 = arith.addf %75, %77 : vector<64x128xf32>
    %79 = vector.shape_cast %78 : vector<64x128xf32> to vector<4x16x128xf32>
    %cst_62 = arith.constant 0.000000e+00 : f32
    %80 = vector.broadcast %cst_62 : f32 to vector<4x16x128xf32>
    %81 = arith.maximumf %79, %80 : vector<4x16x128xf32>
    %c0_63 = arith.constant 0 : index
    %c8_64 = arith.constant 8 : index
    %c0_65 = arith.constant 0 : index
    %82 = vector.load %arg21[%c0_63, %c8_64, %c0_65] : memref<4x24x128xf32, #tpu.memory_space<vmem>>, vector<4x16x128xf32>
    tpu.vector_store %arg21[%c0_63, %c8_64, %c0_65], %81 {strides = array<i32>} : memref<4x24x128xf32, #tpu.memory_space<vmem>>, vector<4x16x128xf32>,
    %c0_66 = arith.constant 0 : index
    %c4_67 = arith.constant 4 : index
    %c0_68 = arith.constant 0 : index
    %83 = vector.load %arg21[%c0_66, %c4_67, %c0_68] : memref<4x24x128xf32, #tpu.memory_space<vmem>>, vector<4x16x128xf32>
    %c0_69 = arith.constant 0 : index
    %c6_70 = arith.constant 6 : index
    %c0_71 = arith.constant 0 : index
    %84 = vector.load %arg21[%c0_69, %c6_70, %c0_71] : memref<4x24x128xf32, #tpu.memory_space<vmem>>, vector<4x16x128xf32>
    %c32_i32_72 = arith.constant 32 : i32
    %85 = tpu.dynamic_rotate %84 by %c32_i32_72 dim 2 : vector<4x16x128xf32>, i32 -> vector<4x16x128xf32>
    %86 = arith.addf %83, %85 : vector<4x16x128xf32>
    %c64_i32_73 = arith.constant 64 : i32
    %87 = tpu.dynamic_rotate %81 by %c64_i32_73 dim 2 : vector<4x16x128xf32>, i32 -> vector<4x16x128xf32>
    %88 = arith.addf %86, %87 : vector<4x16x128xf32>
    %89 = vector.shape_cast %88 : vector<4x16x128xf32> to vector<64x128xf32>
    %90 = arith.truncf %89 : vector<64x128xf32> to vector<64x128xbf16>
    %c0_74 = arith.constant 0 : index
    %c0_75 = arith.constant 0 : index
    %91 = vector.load %arg10[%c0_74, %c0_75] : memref<128x128xbf16, #tpu.memory_space<vmem>>, vector<128x128xbf16>
    %cst_76 = arith.constant dense<0.000000e+00> : vector<64x128xf32>
    %92 = tpu.matmul %90, %91, %cst_76 {dimension_numbers = #tpu.dot_dimension_numbers<[1], [0], [0], [1], [0, 0, 1, 1], [], []>} : vector<64x128xbf16>, vector<128x128xbf16>, vector<64x128xf32> -> vector<64x128xf32>
    %c0_77 = arith.constant 0 : index
    %c0_78 = arith.constant 0 : index
    %93 = vector.load %arg11[%c0_77, %c0_78] : memref<1x128xf32, #tpu.memory_space<vmem>>, vector<1x128xf32>
    %94 = vector.broadcast %93 : vector<1x128xf32> to vector<64x128xf32>
    %95 = arith.addf %92, %94 : vector<64x128xf32>
    %96 = vector.shape_cast %95 : vector<64x128xf32> to vector<4x16x128xf32>
    %cst_79 = arith.constant 0.000000e+00 : f32
    %97 = vector.broadcast %cst_79 : f32 to vector<4x16x128xf32>
    %98 = arith.maximumf %96, %97 : vector<4x16x128xf32>
    %99 = arith.addf %98, %64 : vector<4x16x128xf32>
    %cst_80 = arith.constant 0.000000e+00 : f32
    %100 = vector.broadcast %cst_80 : f32 to vector<4x16x128xf32>
    %101 = arith.maximumf %99, %100 : vector<4x16x128xf32>
    %c0_81 = arith.constant 0 : index
    %c8_82 = arith.constant 8 : index
    %c0_83 = arith.constant 0 : index
    %102 = vector.load %arg21[%c0_81, %c8_82, %c0_83] : memref<4x24x128xf32, #tpu.memory_space<vmem>>, vector<4x16x128xf32>
    tpu.vector_store %arg21[%c0_81, %c8_82, %c0_83], %101 {strides = array<i32>} : memref<4x24x128xf32, #tpu.memory_space<vmem>>, vector<4x16x128xf32>,
    %c0_84 = arith.constant 0 : index
    %c0_85 = arith.constant 0 : index
    %c0_86 = arith.constant 0 : index
    %103 = vector.load %arg21[%c0_84, %c0_85, %c0_86] : memref<4x24x128xf32, #tpu.memory_space<vmem>>, vector<4x16x128xf32>
    %c0_87 = arith.constant 0 : index
    %c4_88 = arith.constant 4 : index
    %c0_89 = arith.constant 0 : index
    %104 = vector.load %arg21[%c0_87, %c4_88, %c0_89] : memref<4x24x128xf32, #tpu.memory_space<vmem>>, vector<4x16x128xf32>
    %c32_i32_90 = arith.constant 32 : i32
    %105 = tpu.dynamic_rotate %104 by %c32_i32_90 dim 2 : vector<4x16x128xf32>, i32 -> vector<4x16x128xf32>
    %106 = arith.addf %103, %105 : vector<4x16x128xf32>
    %c64_i32_91 = arith.constant 64 : i32
    %107 = tpu.dynamic_rotate %101 by %c64_i32_91 dim 2 : vector<4x16x128xf32>, i32 -> vector<4x16x128xf32>
    %108 = arith.addf %106, %107 : vector<4x16x128xf32>
    %109 = vector.shape_cast %108 : vector<4x16x128xf32> to vector<64x128xf32>
    %110 = arith.truncf %109 : vector<64x128xf32> to vector<64x128xbf16>
    %c0_92 = arith.constant 0 : index
    %c0_93 = arith.constant 0 : index
    %111 = vector.load %arg12[%c0_92, %c0_93] : memref<128x128xbf16, #tpu.memory_space<vmem>>, vector<128x128xbf16>
    %cst_94 = arith.constant dense<0.000000e+00> : vector<64x128xf32>
    %112 = tpu.matmul %110, %111, %cst_94 {dimension_numbers = #tpu.dot_dimension_numbers<[1], [0], [0], [1], [0, 0, 1, 1], [], []>} : vector<64x128xbf16>, vector<128x128xbf16>, vector<64x128xf32> -> vector<64x128xf32>
    %c0_95 = arith.constant 0 : index
    %c0_96 = arith.constant 0 : index
    %113 = vector.load %arg13[%c0_95, %c0_96] : memref<1x128xf32, #tpu.memory_space<vmem>>, vector<1x128xf32>
    %114 = vector.broadcast %113 : vector<1x128xf32> to vector<64x128xf32>
    %115 = arith.addf %112, %114 : vector<64x128xf32>
    %116 = vector.shape_cast %115 : vector<64x128xf32> to vector<4x16x128xf32>
    %cst_97 = arith.constant 0.000000e+00 : f32
    %117 = vector.broadcast %cst_97 : f32 to vector<4x16x128xf32>
    %118 = arith.maximumf %116, %117 : vector<4x16x128xf32>
    %119 = vector.shape_cast %101 : vector<4x16x128xf32> to vector<64x128xf32>
    %120 = arith.truncf %119 : vector<64x128xf32> to vector<64x128xbf16>
    %c0_98 = arith.constant 0 : index
    %c0_99 = arith.constant 0 : index
    %121 = vector.load %arg16[%c0_98, %c0_99] : memref<128x128xbf16, #tpu.memory_space<vmem>>, vector<128x128xbf16>
    %cst_100 = arith.constant dense<0.000000e+00> : vector<64x128xf32>
    %122 = tpu.matmul %120, %121, %cst_100 {dimension_numbers = #tpu.dot_dimension_numbers<[1], [0], [0], [1], [0, 0, 1, 1], [], []>} : vector<64x128xbf16>, vector<128x128xbf16>, vector<64x128xf32> -> vector<64x128xf32>
    %c0_101 = arith.constant 0 : index
    %c0_102 = arith.constant 0 : index
    %123 = vector.load %arg17[%c0_101, %c0_102] : memref<1x128xf32, #tpu.memory_space<vmem>>, vector<1x128xf32>
    %124 = vector.broadcast %123 : vector<1x128xf32> to vector<64x128xf32>
    %125 = arith.addf %122, %124 : vector<64x128xf32>
    %126 = vector.shape_cast %125 : vector<64x128xf32> to vector<4x16x128xf32>
    %c0_103 = arith.constant 0 : index
    %c8_104 = arith.constant 8 : index
    %c0_105 = arith.constant 0 : index
    %127 = vector.load %arg21[%c0_103, %c8_104, %c0_105] : memref<4x24x128xf32, #tpu.memory_space<vmem>>, vector<4x16x128xf32>
    tpu.vector_store %arg21[%c0_103, %c8_104, %c0_105], %118 {strides = array<i32>} : memref<4x24x128xf32, #tpu.memory_space<vmem>>, vector<4x16x128xf32>,
    %c0_106 = arith.constant 0 : index
    %c0_107 = arith.constant 0 : index
    %c0_108 = arith.constant 0 : index
    %128 = vector.load %arg21[%c0_106, %c0_107, %c0_108] : memref<4x24x128xf32, #tpu.memory_space<vmem>>, vector<4x16x128xf32>
    %c0_109 = arith.constant 0 : index
    %c4_110 = arith.constant 4 : index
    %c0_111 = arith.constant 0 : index
    %129 = vector.load %arg21[%c0_109, %c4_110, %c0_111] : memref<4x24x128xf32, #tpu.memory_space<vmem>>, vector<4x16x128xf32>
    %c16_i32 = arith.constant 16 : i32
    %130 = tpu.dynamic_rotate %129 by %c16_i32 dim 2 : vector<4x16x128xf32>, i32 -> vector<4x16x128xf32>
    %131 = arith.addf %128, %130 : vector<4x16x128xf32>
    %c32_i32_112 = arith.constant 32 : i32
    %132 = tpu.dynamic_rotate %118 by %c32_i32_112 dim 2 : vector<4x16x128xf32>, i32 -> vector<4x16x128xf32>
    %133 = arith.addf %131, %132 : vector<4x16x128xf32>
    %134 = vector.shape_cast %133 : vector<4x16x128xf32> to vector<64x128xf32>
    %135 = arith.truncf %134 : vector<64x128xf32> to vector<64x128xbf16>
    %c0_113 = arith.constant 0 : index
    %c0_114 = arith.constant 0 : index
    %136 = vector.load %arg14[%c0_113, %c0_114] : memref<128x128xbf16, #tpu.memory_space<vmem>>, vector<128x128xbf16>
    %cst_115 = arith.constant dense<0.000000e+00> : vector<64x128xf32>
    %137 = tpu.matmul %135, %136, %cst_115 {dimension_numbers = #tpu.dot_dimension_numbers<[1], [0], [0], [1], [0, 0, 1, 1], [], []>} : vector<64x128xbf16>, vector<128x128xbf16>, vector<64x128xf32> -> vector<64x128xf32>
    %c0_116 = arith.constant 0 : index
    %c0_117 = arith.constant 0 : index
    %138 = vector.load %arg15[%c0_116, %c0_117] : memref<1x128xf32, #tpu.memory_space<vmem>>, vector<1x128xf32>
    %139 = vector.broadcast %138 : vector<1x128xf32> to vector<64x128xf32>
    %140 = arith.addf %137, %139 : vector<64x128xf32>
    %141 = vector.shape_cast %140 : vector<64x128xf32> to vector<4x16x128xf32>
    %cst_118 = arith.constant 0.000000e+00 : f32
    %142 = vector.broadcast %cst_118 : f32 to vector<4x16x128xf32>
    %143 = arith.maximumf %141, %142 : vector<4x16x128xf32>
    %144 = arith.addf %143, %126 : vector<4x16x128xf32>
    %cst_119 = arith.constant 0.000000e+00 : f32
    %145 = vector.broadcast %cst_119 : f32 to vector<4x16x128xf32>
    %146 = arith.maximumf %144, %145 : vector<4x16x128xf32>
    %147 = vector.shape_cast %146 : vector<4x16x128xf32> to vector<64x128xf32>
    %148 = arith.truncf %147 : vector<64x128xf32> to vector<64x128xbf16>
    %c0_120 = arith.constant 0 : index
    %c0_121 = arith.constant 0 : index
    %149 = vector.load %arg18[%c0_120, %c0_121] : memref<128x128xbf16, #tpu.memory_space<vmem>>, vector<128x128xbf16>
    %cst_122 = arith.constant dense<0.000000e+00> : vector<64x128xf32>
    %150 = tpu.matmul %148, %149, %cst_122 {dimension_numbers = #tpu.dot_dimension_numbers<[1], [0], [0], [1], [0, 0, 1, 1], [], []>} : vector<64x128xbf16>, vector<128x128xbf16>, vector<64x128xf32> -> vector<64x128xf32>
    %c0_123 = arith.constant 0 : index
    %c0_124 = arith.constant 0 : index
    %151 = vector.load %arg19[%c0_123, %c0_124] : memref<1x128xf32, #tpu.memory_space<vmem>>, vector<1x128xf32>
    %152 = vector.broadcast %151 : vector<1x128xf32> to vector<64x128xf32>
    %153 = arith.addf %150, %152 : vector<64x128xf32>
    %154 = vector.shape_cast %153 : vector<64x128xf32> to vector<4x16x128xf32>
    %c0_125 = arith.constant 0 : index
    %c0_126 = arith.constant 0 : index
    %c0_127 = arith.constant 0 : index
    %155 = vector.load %arg20[%c0_125, %c0_126, %c0_127] : memref<4x16x128xf32, #tpu.memory_space<vmem>>, vector<4x16x128xf32>
    tpu.vector_store %arg20[%c0_125, %c0_126, %c0_127], %154 {strides = array<i32>} : memref<4x16x128xf32, #tpu.memory_space<vmem>>, vector<4x16x128xf32>,
    return
  }
  func.func @transform_0(%arg0: i32) -> (i32, i32, i32) {
    %c0_i32 = arith.constant 0 : i32
    %c0_i32_0 = arith.constant 0 : i32
    %c0_i32_1 = arith.constant 0 : i32
    return %arg0, %c0_i32, %c0_i32_0 : i32, i32, i32
  }
  func.func @transform_1(%arg0: i32) -> (i32, i32) {
    %c0_i32 = arith.constant 0 : i32
    %c0_i32_0 = arith.constant 0 : i32
    %c0_i32_1 = arith.constant 0 : i32
    return %c0_i32, %c0_i32_0 : i32, i32
  }
  func.func @transform_2(%arg0: i32) -> (i32, i32) {
    %c0_i32 = arith.constant 0 : i32
    %c0_i32_0 = arith.constant 0 : i32
    %c0_i32_1 = arith.constant 0 : i32
    return %c0_i32, %c0_i32_0 : i32, i32
  }
  func.func @transform_3(%arg0: i32) -> (i32, i32) {
    %c0_i32 = arith.constant 0 : i32
    %c0_i32_0 = arith.constant 0 : i32
    %c0_i32_1 = arith.constant 0 : i32
    return %c0_i32, %c0_i32_0 : i32, i32
  }
  func.func @transform_4(%arg0: i32) -> (i32, i32) {
    %c0_i32 = arith.constant 0 : i32
    %c0_i32_0 = arith.constant 0 : i32
    %c0_i32_1 = arith.constant 0 : i32
    return %c0_i32, %c0_i32_0 : i32, i32
  }
  func.func @transform_5(%arg0: i32) -> (i32, i32) {
    %c0_i32 = arith.constant 0 : i32
    %c0_i32_0 = arith.constant 0 : i32
    %c0_i32_1 = arith.constant 0 : i32
    return %c0_i32, %c0_i32_0 : i32, i32
  }
  func.func @transform_6(%arg0: i32) -> (i32, i32) {
    %c0_i32 = arith.constant 0 : i32
    %c0_i32_0 = arith.constant 0 : i32
    %c0_i32_1 = arith.constant 0 : i32
    return %c0_i32, %c0_i32_0 : i32, i32
  }
  func.func @transform_7(%arg0: i32) -> (i32, i32) {
    %c0_i32 = arith.constant 0 : i32
    %c0_i32_0 = arith.constant 0 : i32
    %c0_i32_1 = arith.constant 0 : i32
    return %c0_i32, %c0_i32_0 : i32, i32
  }
  func.func @transform_8(%arg0: i32) -> (i32, i32) {
    %c0_i32 = arith.constant 0 : i32
    %c0_i32_0 = arith.constant 0 : i32
    %c0_i32_1 = arith.constant 0 : i32
    return %c0_i32, %c0_i32_0 : i32, i32
  }
  func.func @transform_9(%arg0: i32) -> (i32, i32) {
    %c0_i32 = arith.constant 0 : i32
    %c0_i32_0 = arith.constant 0 : i32
    %c0_i32_1 = arith.constant 0 : i32
    return %c0_i32, %c0_i32_0 : i32, i32
  }
  func.func @transform_10(%arg0: i32) -> (i32, i32) {
    %c0_i32 = arith.constant 0 : i32
    %c0_i32_0 = arith.constant 0 : i32
    %c0_i32_1 = arith.constant 0 : i32
    return %c0_i32, %c0_i32_0 : i32, i32
  }
  func.func @transform_11(%arg0: i32) -> (i32, i32) {
    %c0_i32 = arith.constant 0 : i32
    %c0_i32_0 = arith.constant 0 : i32
    %c0_i32_1 = arith.constant 0 : i32
    return %c0_i32, %c0_i32_0 : i32, i32
  }
  func.func @transform_12(%arg0: i32) -> (i32, i32) {
    %c0_i32 = arith.constant 0 : i32
    %c0_i32_0 = arith.constant 0 : i32
    %c0_i32_1 = arith.constant 0 : i32
    return %c0_i32, %c0_i32_0 : i32, i32
  }
  func.func @transform_13(%arg0: i32) -> (i32, i32) {
    %c0_i32 = arith.constant 0 : i32
    %c0_i32_0 = arith.constant 0 : i32
    %c0_i32_1 = arith.constant 0 : i32
    return %c0_i32, %c0_i32_0 : i32, i32
  }
  func.func @transform_14(%arg0: i32) -> (i32, i32) {
    %c0_i32 = arith.constant 0 : i32
    %c0_i32_0 = arith.constant 0 : i32
    %c0_i32_1 = arith.constant 0 : i32
    return %c0_i32, %c0_i32_0 : i32, i32
  }
  func.func @transform_15(%arg0: i32) -> (i32, i32) {
    %c0_i32 = arith.constant 0 : i32
    %c0_i32_0 = arith.constant 0 : i32
    %c0_i32_1 = arith.constant 0 : i32
    return %c0_i32, %c0_i32_0 : i32, i32
  }
  func.func @transform_16(%arg0: i32) -> (i32, i32) {
    %c0_i32 = arith.constant 0 : i32
    %c0_i32_0 = arith.constant 0 : i32
    %c0_i32_1 = arith.constant 0 : i32
    return %c0_i32, %c0_i32_0 : i32, i32
  }
  func.func @transform_17(%arg0: i32) -> (i32, i32) {
    %c0_i32 = arith.constant 0 : i32
    %c0_i32_0 = arith.constant 0 : i32
    %c0_i32_1 = arith.constant 0 : i32
    return %c0_i32, %c0_i32_0 : i32, i32
  }
  func.func @transform_18(%arg0: i32) -> (i32, i32) {
    %c0_i32 = arith.constant 0 : i32
    %c0_i32_0 = arith.constant 0 : i32
    %c0_i32_1 = arith.constant 0 : i32
    return %c0_i32, %c0_i32_0 : i32, i32
  }
  func.func @transform_19(%arg0: i32) -> (i32, i32, i32) {
    %c0_i32 = arith.constant 0 : i32
    %c0_i32_0 = arith.constant 0 : i32
    %c0_i32_1 = arith.constant 0 : i32
    return %arg0, %c0_i32, %c0_i32_0 : i32, i32, i32
  }
}

</mosaic_0001>

<llo_original>
// kernel: forward.1
$region0: #{forward.1}
  #allocation0 [shape = 'u32[]', space=smem, size = 0x4, offset = 0x4, fixed_abs, tag = 'smem constant byte address 0x4 - core index']
  #allocation1 [shape = 'u32[72,128]{1,0:T(1,128)}', space=vmem, size = 0x9000, scoped, tag = 'internal scratch']
  #allocation2 [shape = 'f32[4,24,128]{2,1,0:T(8,128)}', space=vmem, size = 0xc000, scoped, tag = 'scratch operand']
  %s0 = inlined_call_operand.vmem [shape: f32[8,16,8], index: 0, kind: input, shape index: {}]
  %s1 = inlined_call_operand.hbm [shape: bf16[8,128], index: 1, kind: input, shape index: {}]
  %s2 = inlined_call_operand.hbm [shape: f32[1,128], index: 2, kind: input, shape index: {}]
  %s3 = inlined_call_operand.vmem [shape: bf16[128,128], index: 3, kind: input, shape index: {}]
  %s4 = inlined_call_operand.hbm [shape: f32[1,128], index: 4, kind: input, shape index: {}]
  %s5 = inlined_call_operand.vmem [shape: bf16[128,128], index: 5, kind: input, shape index: {}]
  %s6 = inlined_call_operand.vmem [shape: f32[1,128], index: 6, kind: input, shape index: {}]
  %s7 = inlined_call_operand.vmem [shape: bf16[128,128], index: 7, kind: input, shape index: {}]
  %s8 = inlined_call_operand.vmem [shape: f32[1,128], index: 8, kind: input, shape index: {}]
  %s9 = inlined_call_operand.hbm [shape: bf16[128,128], index: 9, kind: input, shape index: {}]
  %s10 = inlined_call_operand.vmem [shape: f32[1,128], index: 10, kind: input, shape index: {}]
  %s11 = inlined_call_operand.hbm [shape: bf16[128,128], index: 11, kind: input, shape index: {}]
  %s12 = inlined_call_operand.vmem [shape: f32[1,128], index: 12, kind: input, shape index: {}]
  %s13 = inlined_call_operand.hbm [shape: bf16[128,128], index: 13, kind: input, shape index: {}]
  %s14 = inlined_call_operand.vmem [shape: f32[1,128], index: 14, kind: input, shape index: {}]
  %s15 = inlined_call_operand.hbm [shape: bf16[128,128], index: 15, kind: input, shape index: {}]
  %s16 = inlined_call_operand.vmem [shape: f32[1,128], index: 16, kind: input, shape index: {}]
  %s17 = inlined_call_operand.hbm [shape: bf16[128,128], index: 17, kind: input, shape index: {}]
  %s18 = inlined_call_operand.vmem [shape: f32[1,128], index: 18, kind: input, shape index: {}]
  %s19 = inlined_call_operand.hbm [shape: f32[8,16,128], index: 19, kind: output, shape index: {}]
  %s20 = sld [smem:[#allocation0]]
  $region141: #{forward.1} parent=0
    _
  %s22 = ssub.s32 1, %s20
  %s23 = scalar_select 0, %s22, %s20
  $region1: #{forward.1} parent=0
    #allocation3 [shape = 'u8[2048]{0}', space=vmem, size = 0x800, scoped, tag = 'input window, operand 1, single buffered']
    #allocation4 [shape = 's32[2]{0}', space=sflag, size = 0x8, scoped, tag = 'scoped memory for forward.1']
    #allocation5 [shape = 's32[2]{0}', space=sflag, size = 0x8, scoped, tag = 'scoped memory for forward.1']
    #allocation6 [shape = 'u8[512]{0}', space=vmem, size = 0x400, scoped, tag = 'input window, operand 2, single buffered']
    #allocation7 [shape = 's32[1]{0}', space=sflag, size = 0x4, scoped, tag = 'scoped memory for forward.1']
    #allocation8 [shape = 'u8[512]{0}', space=vmem, size = 0x400, scoped, tag = 'input window, operand 4, single buffered']
    #allocation9 [shape = 'u8[32768]{0}', space=vmem, size = 0x8000, scoped, tag = 'input window, operand 9, single buffered']
    #allocation10 [shape = 's32[1]{0}', space=sflag, size = 0x4, scoped, tag = 'scoped memory for forward.1']
    #allocation11 [shape = 'u8[32768]{0}', space=vmem, size = 0x8000, scoped, tag = 'input window, operand 11, single buffered']
    #allocation12 [shape = 'u8[32768]{0}', space=vmem, size = 0x8000, scoped, tag = 'input window, operand 13, single buffered']
    #allocation13 [shape = 's32[1]{0}', space=sflag, size = 0x4, scoped, tag = 'scoped memory for forward.1']
    #allocation14 [shape = 'u8[32768]{0}', space=vmem, size = 0x8000, scoped, tag = 'input window, operand 15, single buffered']
    #allocation15 [shape = 'u8[32768]{0}', space=vmem, size = 0x8000, scoped, tag = 'input window, operand 17, single buffered']
    #allocation16 [shape = 's32[1]{0}', space=sflag, size = 0x4, scoped, tag = 'scoped memory for forward.1']
    #allocation17 [shape = 'u8[65536]{0}', space=vmem, size = 0x10000, scoped, tag = 'output window, operand 0']
    %24 = vsyncpa [#allocation4], 0
    %25 = vsyncpa [#allocation7], 0
    %26 = vsyncpa [#allocation10], 0
    %27 = vsyncpa [#allocation13], 0
    %28 = vsyncpa [#allocation16], 0
    %29 = vsyncpa [#allocation5], 0
    %s30 = scalar_lea.sflag [#allocation5], 1
    %31 = vsyncpa %s30, 0
    loop: start=0, step=1, limit=4
    $region2: #{forward.1} parent=1 // loop_pre_header
      _
    $region3: #{forward.1} parent=1 // loop_header
      %s33 = sphi 0, %s37
      %p34 = scmp.ge.s32.totalorder %s33, 4
      %s43 = sphi 0, %s45
      %s46 = sphi 0, %s43
      %s47 = sphi 0, %s46
      %s63 = sphi 0, %s47
      %s67 = sphi 0, %s67
      %s69 = sphi 0, %s67
      %s70 = sphi 0, %s69
      %s84 = sphi 0, %s70
      %s88 = sphi 0, %s88
      %s90 = sphi 0, %s88
      %s91 = sphi 0, %s90
      %s105 = sphi 0, %s91
      %s109 = sphi 0, %s109
      %s111 = sphi 0, %s109
      %s112 = sphi 0, %s111
      %s126 = sphi 0, %s112
      %s130 = sphi 0, %s130
      %s132 = sphi 0, %s130
      %s133 = sphi 0, %s132
      %s147 = sphi 0, %s133
      %s151 = sphi 0, %s151
      %s153 = sphi 0, %s151
      %s154 = sphi 0, %s153
      %s168 = sphi 0, %s154
      %s172 = sphi 0, %s172
      %s174 = sphi 0, %s172
      %s175 = sphi 0, %s174
      %s189 = sphi 0, %s175
      %s193 = sphi 0, %s193
      %s195 = sphi 0, %s193
      %s196 = sphi 0, %s195
      %s210 = sphi 0, %s196
      %s214 = sphi 0, %s214
      %s216 = sphi 0, %s214
      %s217 = sphi 0, %s216
      %s231 = sphi 0, %s217
      %s235 = sphi 0, %s235
      %s237 = sphi 0, %s235
      %s238 = sphi 0, %s237
      %s252 = sphi 0, %s238
      %s256 = sphi 0, %s256
      %s258 = sphi 0, %s256
      %s259 = sphi 0, %s258
      %s273 = sphi 0, %s259
      %s277 = sphi 0, %s277
      %s279 = sphi 0, %s277
      %s280 = sphi 0, %s279
      %s294 = sphi 0, %s280
      %s298 = sphi 0, %s298
      %s300 = sphi 0, %s298
      %s301 = sphi 0, %s300
      %s315 = sphi 0, %s301
      %s319 = sphi 0, %s319
      %s321 = sphi 0, %s319
      %s322 = sphi 0, %s321
      %s336 = sphi 0, %s322
      %s340 = sphi 0, %s340
      %s342 = sphi 0, %s340
      %s343 = sphi 0, %s342
      %s357 = sphi 0, %s343
      %s361 = sphi 0, %s361
      %s363 = sphi 0, %s361
      %s364 = sphi 0, %s363
      %s378 = sphi 0, %s364
      %s382 = sphi 0, %s382
      %s384 = sphi 0, %s382
      %s385 = sphi 0, %s384
      %s399 = sphi 0, %s385
      %s403 = sphi 0, %s403
      %s405 = sphi 0, %s403
      %s406 = sphi 0, %s405
      %s420 = sphi 0, %s406
      %s424 = sphi 0, %s424
      %s426 = sphi 0, %s424
      %s427 = sphi 0, %s426
      %s441 = sphi 0, %s427
      %s447 = sphi 0, %s449
      %s450 = sphi 0, %s447
      %s451 = sphi 0, %s450
      %s467 = sphi 0, %s451
    $region4: #{forward.1} parent=1 // loop_header_branch
      %36 = sbr.rel (%p34) target = $region8
    $region5: #{forward.1} parent=1 // loop_body
      %s38 = ssub.s32 %s33, 1
      %s39 = ssub.s32 %s33, 2
      %s40 = sadd.s32 %s33, 1
      %s41 = ssub.s32 %s33, %s40
      %p42 = scmp.eq.s32.totalorder %s41, 0
      %s44 = sadd.s32 %s43, 1
      %s45 = scalar_select %p42, %s43, %s44
      %p48 = pneg %p42
      %p49 = scmp.eq.s32.totalorder %s33, 1
      %p50 = por %p48, %p49
      %p51 = scmp.ne.s32.totalorder %s43, %s46
      %p52 = scmp.eq.s32.totalorder %s33, 0
      %p53 = por %p51, %p52
      %p54 = scmp.ne.s32.totalorder %s43, %s46
      %p55 = scmp.eq.s32.totalorder %s38, 1
      %p56 = por %p54, %p55
      %p57 = scmp.ne.s32.totalorder %s46, %s47
      %p58 = scmp.eq.s32.totalorder %s38, 0
      %p59 = por %p57, %p58
      %p60 = scmp.ne.s32.totalorder %s46, %s47
      %p61 = scmp.eq.s32.totalorder %s39, 1
      %p62 = por %p60, %p61
      %p64 = scmp.ne.s32.totalorder %s47, %s63
      %p65 = scmp.eq.s32.totalorder %s39, 0
      %p66 = por %p64, %p65
      %s68 = sadd.s32 %s67, 1
      %p71 = scmp.eq.s32.totalorder %s33, 1
      %p72 = scmp.ne.s32.totalorder %s67, %s69
      %p73 = scmp.eq.s32.totalorder %s33, 0
      %p74 = por %p72, %p73
      %p75 = scmp.ne.s32.totalorder %s67, %s69
      %p76 = scmp.eq.s32.totalorder %s38, 1
      %p77 = por %p75, %p76
      %p78 = scmp.ne.s32.totalorder %s69, %s70
      %p79 = scmp.eq.s32.totalorder %s38, 0
      %p80 = por %p78, %p79
      %p81 = scmp.ne.s32.totalorder %s69, %s70
      %p82 = scmp.eq.s32.totalorder %s39, 1
      %p83 = por %p81, %p82
      %p85 = scmp.ne.s32.totalorder %s70, %s84
      %p86 = scmp.eq.s32.totalorder %s39, 0
      %p87 = por %p85, %p86
      %s89 = sadd.s32 %s88, 1
      %p92 = scmp.eq.s32.totalorder %s33, 1
      %p93 = scmp.ne.s32.totalorder %s88, %s90
      %p94 = scmp.eq.s32.totalorder %s33, 0
      %p95 = por %p93, %p94
      %p96 = scmp.ne.s32.totalorder %s88, %s90
      %p97 = scmp.eq.s32.totalorder %s38, 1
      %p98 = por %p96, %p97
      %p99 = scmp.ne.s32.totalorder %s90, %s91
      %p100 = scmp.eq.s32.totalorder %s38, 0
      %p101 = por %p99, %p100
      %p102 = scmp.ne.s32.totalorder %s90, %s91
      %p103 = scmp.eq.s32.totalorder %s39, 1
      %p104 = por %p102, %p103
      %p106 = scmp.ne.s32.totalorder %s91, %s105
      %p107 = scmp.eq.s32.totalorder %s39, 0
      %p108 = por %p106, %p107
      %s110 = sadd.s32 %s109, 1
      %p113 = scmp.eq.s32.totalorder %s33, 1
      %p114 = scmp.ne.s32.totalorder %s109, %s111
      %p115 = scmp.eq.s32.totalorder %s33, 0
      %p116 = por %p114, %p115
      %p117 = scmp.ne.s32.totalorder %s109, %s111
      %p118 = scmp.eq.s32.totalorder %s38, 1
      %p119 = por %p117, %p118
      %p120 = scmp.ne.s32.totalorder %s111, %s112
      %p121 = scmp.eq.s32.totalorder %s38, 0
      %p122 = por %p120, %p121
      %p123 = scmp.ne.s32.totalorder %s111, %s112
      %p124 = scmp.eq.s32.totalorder %s39, 1
      %p125 = por %p123, %p124
      %p127 = scmp.ne.s32.totalorder %s112, %s126
      %p128 = scmp.eq.s32.totalorder %s39, 0
      %p129 = por %p127, %p128
      %s131 = sadd.s32 %s130, 1
      %p134 = scmp.eq.s32.totalorder %s33, 1
      %p135 = scmp.ne.s32.totalorder %s130, %s132
      %p136 = scmp.eq.s32.totalorder %s33, 0
      %p137 = por %p135, %p136
      %p138 = scmp.ne.s32.totalorder %s130, %s132
      %p139 = scmp.eq.s32.totalorder %s38, 1
      %p140 = por %p138, %p139
      %p141 = scmp.ne.s32.totalorder %s132, %s133
      %p142 = scmp.eq.s32.totalorder %s38, 0
      %p143 = por %p141, %p142
      %p144 = scmp.ne.s32.totalorder %s132, %s133
      %p145 = scmp.eq.s32.totalorder %s39, 1
      %p146 = por %p144, %p145
      %p148 = scmp.ne.s32.totalorder %s133, %s147
      %p149 = scmp.eq.s32.totalorder %s39, 0
      %p150 = por %p148, %p149
      %s152 = sadd.s32 %s151, 1
      %p155 = scmp.eq.s32.totalorder %s33, 1
      %p156 = scmp.ne.s32.totalorder %s151, %s153
      %p157 = scmp.eq.s32.totalorder %s33, 0
      %p158 = por %p156, %p157
      %p159 = scmp.ne.s32.totalorder %s151, %s153
      %p160 = scmp.eq.s32.totalorder %s38, 1
      %p161 = por %p159, %p160
      %p162 = scmp.ne.s32.totalorder %s153, %s154
      %p163 = scmp.eq.s32.totalorder %s38, 0
      %p164 = por %p162, %p163
      %p165 = scmp.ne.s32.totalorder %s153, %s154
      %p166 = scmp.eq.s32.totalorder %s39, 1
      %p167 = por %p165, %p166
      %p169 = scmp.ne.s32.totalorder %s154, %s168
      %p170 = scmp.eq.s32.totalorder %s39, 0
      %p171 = por %p169, %p170
      %s173 = sadd.s32 %s172, 1
      %p176 = scmp.eq.s32.totalorder %s33, 1
      %p177 = scmp.ne.s32.totalorder %s172, %s174
      %p178 = scmp.eq.s32.totalorder %s33, 0
      %p179 = por %p177, %p178
      %p180 = scmp.ne.s32.totalorder %s172, %s174
      %p181 = scmp.eq.s32.totalorder %s38, 1
      %p182 = por %p180, %p181
      %p183 = scmp.ne.s32.totalorder %s174, %s175
      %p184 = scmp.eq.s32.totalorder %s38, 0
      %p185 = por %p183, %p184
      %p186 = scmp.ne.s32.totalorder %s174, %s175
      %p187 = scmp.eq.s32.totalorder %s39, 1
      %p188 = por %p186, %p187
      %p190 = scmp.ne.s32.totalorder %s175, %s189
      %p191 = scmp.eq.s32.totalorder %s39, 0
      %p192 = por %p190, %p191
      %s194 = sadd.s32 %s193, 1
      %p197 = scmp.eq.s32.totalorder %s33, 1
      %p198 = scmp.ne.s32.totalorder %s193, %s195
      %p199 = scmp.eq.s32.totalorder %s33, 0
      %p200 = por %p198, %p199
      %p201 = scmp.ne.s32.totalorder %s193, %s195
      %p202 = scmp.eq.s32.totalorder %s38, 1
      %p203 = por %p201, %p202
      %p204 = scmp.ne.s32.totalorder %s195, %s196
      %p205 = scmp.eq.s32.totalorder %s38, 0
      %p206 = por %p204, %p205
      %p207 = scmp.ne.s32.totalorder %s195, %s196
      %p208 = scmp.eq.s32.totalorder %s39, 1
      %p209 = por %p207, %p208
      %p211 = scmp.ne.s32.totalorder %s196, %s210
      %p212 = scmp.eq.s32.totalorder %s39, 0
      %p213 = por %p211, %p212
      %s215 = sadd.s32 %s214, 1
      %p218 = scmp.eq.s32.totalorder %s33, 1
      %p219 = scmp.ne.s32.totalorder %s214, %s216
      %p220 = scmp.eq.s32.totalorder %s33, 0
      %p221 = por %p219, %p220
      %p222 = scmp.ne.s32.totalorder %s214, %s216
      %p223 = scmp.eq.s32.totalorder %s38, 1
      %p224 = por %p222, %p223
      %p225 = scmp.ne.s32.totalorder %s216, %s217
      %p226 = scmp.eq.s32.totalorder %s38, 0
      %p227 = por %p225, %p226
      %p228 = scmp.ne.s32.totalorder %s216, %s217
      %p229 = scmp.eq.s32.totalorder %s39, 1
      %p230 = por %p228, %p229
      %p232 = scmp.ne.s32.totalorder %s217, %s231
      %p233 = scmp.eq.s32.totalorder %s39, 0
      %p234 = por %p232, %p233
      %s236 = sadd.s32 %s235, 1
      %p239 = scmp.eq.s32.totalorder %s33, 1
      %p240 = scmp.ne.s32.totalorder %s235, %s237
      %p241 = scmp.eq.s32.totalorder %s33, 0
      %p242 = por %p240, %p241
      %p243 = scmp.ne.s32.totalorder %s235, %s237
      %p244 = scmp.eq.s32.totalorder %s38, 1
      %p245 = por %p243, %p244
      %p246 = scmp.ne.s32.totalorder %s237, %s238
      %p247 = scmp.eq.s32.totalorder %s38, 0
      %p248 = por %p246, %p247
      %p249 = scmp.ne.s32.totalorder %s237, %s238
      %p250 = scmp.eq.s32.totalorder %s39, 1
      %p251 = por %p249, %p250
      %p253 = scmp.ne.s32.totalorder %s238, %s252
      %p254 = scmp.eq.s32.totalorder %s39, 0
      %p255 = por %p253, %p254
      %s257 = sadd.s32 %s256, 1
      %p260 = scmp.eq.s32.totalorder %s33, 1
      %p261 = scmp.ne.s32.totalorder %s256, %s258
      %p262 = scmp.eq.s32.totalorder %s33, 0
      %p263 = por %p261, %p262
      %p264 = scmp.ne.s32.totalorder %s256, %s258
      %p265 = scmp.eq.s32.totalorder %s38, 1
      %p266 = por %p264, %p265
      %p267 = scmp.ne.s32.totalorder %s258, %s259
      %p268 = scmp.eq.s32.totalorder %s38, 0
      %p269 = por %p267, %p268
      %p270 = scmp.ne.s32.totalorder %s258, %s259
      %p271 = scmp.eq.s32.totalorder %s39, 1
      %p272 = por %p270, %p271
      %p274 = scmp.ne.s32.totalorder %s259, %s273
      %p275 = scmp.eq.s32.totalorder %s39, 0
      %p276 = por %p274, %p275
      %s278 = sadd.s32 %s277, 1
      %p281 = scmp.eq.s32.totalorder %s33, 1
      %p282 = scmp.ne.s32.totalorder %s277, %s279
      %p283 = scmp.eq.s32.totalorder %s33, 0
      %p284 = por %p282, %p283
      %p285 = scmp.ne.s32.totalorder %s277, %s279
      %p286 = scmp.eq.s32.totalorder %s38, 1
      %p287 = por %p285, %p286
      %p288 = scmp.ne.s32.totalorder %s279, %s280
      %p289 = scmp.eq.s32.totalorder %s38, 0
      %p290 = por %p288, %p289
      %p291 = scmp.ne.s32.totalorder %s279, %s280
      %p292 = scmp.eq.s32.totalorder %s39, 1
      %p293 = por %p291, %p292
      %p295 = scmp.ne.s32.totalorder %s280, %s294
      %p296 = scmp.eq.s32.totalorder %s39, 0
      %p297 = por %p295, %p296
      %s299 = sadd.s32 %s298, 1
      %p302 = scmp.eq.s32.totalorder %s33, 1
      %p303 = scmp.ne.s32.totalorder %s298, %s300
      %p304 = scmp.eq.s32.totalorder %s33, 0
      %p305 = por %p303, %p304
      %p306 = scmp.ne.s32.totalorder %s298, %s300
      %p307 = scmp.eq.s32.totalorder %s38, 1
      %p308 = por %p306, %p307
      %p309 = scmp.ne.s32.totalorder %s300, %s301
      %p310 = scmp.eq.s32.totalorder %s38, 0
      %p311 = por %p309, %p310
      %p312 = scmp.ne.s32.totalorder %s300, %s301
      %p313 = scmp.eq.s32.totalorder %s39, 1
      %p314 = por %p312, %p313
      %p316 = scmp.ne.s32.totalorder %s301, %s315
      %p317 = scmp.eq.s32.totalorder %s39, 0
      %p318 = por %p316, %p317
      %s320 = sadd.s32 %s319, 1
      %p323 = scmp.eq.s32.totalorder %s33, 1
      %p324 = scmp.ne.s32.totalorder %s319, %s321
      %p325 = scmp.eq.s32.totalorder %s33, 0
      %p326 = por %p324, %p325
      %p327 = scmp.ne.s32.totalorder %s319, %s321
      %p328 = scmp.eq.s32.totalorder %s38, 1
      %p329 = por %p327, %p328
      %p330 = scmp.ne.s32.totalorder %s321, %s322
      %p331 = scmp.eq.s32.totalorder %s38, 0
      %p332 = por %p330, %p331
      %p333 = scmp.ne.s32.totalorder %s321, %s322
      %p334 = scmp.eq.s32.totalorder %s39, 1
      %p335 = por %p333, %p334
      %p337 = scmp.ne.s32.totalorder %s322, %s336
      %p338 = scmp.eq.s32.totalorder %s39, 0
      %p339 = por %p337, %p338
      %s341 = sadd.s32 %s340, 1
      %p344 = scmp.eq.s32.totalorder %s33, 1
      %p345 = scmp.ne.s32.totalorder %s340, %s342
      %p346 = scmp.eq.s32.totalorder %s33, 0
      %p347 = por %p345, %p346
      %p348 = scmp.ne.s32.totalorder %s340, %s342
      %p349 = scmp.eq.s32.totalorder %s38, 1
      %p350 = por %p348, %p349
      %p351 = scmp.ne.s32.totalorder %s342, %s343
      %p352 = scmp.eq.s32.totalorder %s38, 0
      %p353 = por %p351, %p352
      %p354 = scmp.ne.s32.totalorder %s342, %s343
      %p355 = scmp.eq.s32.totalorder %s39, 1
      %p356 = por %p354, %p355
      %p358 = scmp.ne.s32.totalorder %s343, %s357
      %p359 = scmp.eq.s32.totalorder %s39, 0
      %p360 = por %p358, %p359
      %s362 = sadd.s32 %s361, 1
      %p365 = scmp.eq.s32.totalorder %s33, 1
      %p366 = scmp.ne.s32.totalorder %s361, %s363
      %p367 = scmp.eq.s32.totalorder %s33, 0
      %p368 = por %p366, %p367
      %p369 = scmp.ne.s32.totalorder %s361, %s363
      %p370 = scmp.eq.s32.totalorder %s38, 1
      %p371 = por %p369, %p370
      %p372 = scmp.ne.s32.totalorder %s363, %s364
      %p373 = scmp.eq.s32.totalorder %s38, 0
      %p374 = por %p372, %p373
      %p375 = scmp.ne.s32.totalorder %s363, %s364
      %p376 = scmp.eq.s32.totalorder %s39, 1
      %p377 = por %p375, %p376
      %p379 = scmp.ne.s32.totalorder %s364, %s378
      %p380 = scmp.eq.s32.totalorder %s39, 0
      %p381 = por %p379, %p380
      %s383 = sadd.s32 %s382, 1
      %p386 = scmp.eq.s32.totalorder %s33, 1
      %p387 = scmp.ne.s32.totalorder %s382, %s384
      %p388 = scmp.eq.s32.totalorder %s33, 0
      %p389 = por %p387, %p388
      %p390 = scmp.ne.s32.totalorder %s382, %s384
      %p391 = scmp.eq.s32.totalorder %s38, 1
      %p392 = por %p390, %p391
      %p393 = scmp.ne.s32.totalorder %s384, %s385
      %p394 = scmp.eq.s32.totalorder %s38, 0
      %p395 = por %p393, %p394
      %p396 = scmp.ne.s32.totalorder %s384, %s385
      %p397 = scmp.eq.s32.totalorder %s39, 1
      %p398 = por %p396, %p397
      %p400 = scmp.ne.s32.totalorder %s385, %s399
      %p401 = scmp.eq.s32.totalorder %s39, 0
      %p402 = por %p400, %p401
      %s404 = sadd.s32 %s403, 1
      %p407 = scmp.eq.s32.totalorder %s33, 1
      %p408 = scmp.ne.s32.totalorder %s403, %s405
      %p409 = scmp.eq.s32.totalorder %s33, 0
      %p410 = por %p408, %p409
      %p411 = scmp.ne.s32.totalorder %s403, %s405
      %p412 = scmp.eq.s32.totalorder %s38, 1
      %p413 = por %p411, %p412
      %p414 = scmp.ne.s32.totalorder %s405, %s406
      %p415 = scmp.eq.s32.totalorder %s38, 0
      %p416 = por %p414, %p415
      %p417 = scmp.ne.s32.totalorder %s405, %s406
      %p418 = scmp.eq.s32.totalorder %s39, 1
      %p419 = por %p417, %p418
      %p421 = scmp.ne.s32.totalorder %s406, %s420
      %p422 = scmp.eq.s32.totalorder %s39, 0
      %p423 = por %p421, %p422
      %s425 = sadd.s32 %s424, 1
      %p428 = scmp.eq.s32.totalorder %s33, 1
      %p429 = scmp.ne.s32.totalorder %s424, %s426
      %p430 = scmp.eq.s32.totalorder %s33, 0
      %p431 = por %p429, %p430
      %p432 = scmp.ne.s32.totalorder %s424, %s426
      %p433 = scmp.eq.s32.totalorder %s38, 1
      %p434 = por %p432, %p433
      %p435 = scmp.ne.s32.totalorder %s426, %s427
      %p436 = scmp.eq.s32.totalorder %s38, 0
      %p437 = por %p435, %p436
      %p438 = scmp.ne.s32.totalorder %s426, %s427
      %p439 = scmp.eq.s32.totalorder %s39, 1
      %p440 = por %p438, %p439
      %p442 = scmp.ne.s32.totalorder %s427, %s441
      %p443 = scmp.eq.s32.totalorder %s39, 0
      %p444 = por %p442, %p443
      %s445 = ssub.s32 %s33, %s40
      %p446 = scmp.eq.s32.totalorder %s445, 0
      %s448 = sadd.s32 %s447, 1
      %s449 = scalar_select %p446, %s447, %s448
      %p452 = pneg %p446
      %p453 = scmp.eq.s32.totalorder %s33, 1
      %p454 = por %p452, %p453
      %p455 = scmp.ne.s32.totalorder %s447, %s450
      %p456 = scmp.eq.s32.totalorder %s33, 0
      %p457 = por %p455, %p456
      %p458 = scmp.ne.s32.totalorder %s447, %s450
      %p459 = scmp.eq.s32.totalorder %s38, 1
      %p460 = por %p458, %p459
      %p461 = scmp.ne.s32.totalorder %s450, %s451
      %p462 = scmp.eq.s32.totalorder %s38, 0
      %p463 = por %p461, %p462
      %p464 = scmp.ne.s32.totalorder %s450, %s451
      %p465 = scmp.eq.s32.totalorder %s39, 1
      %p466 = por %p464, %p465
      %p468 = scmp.ne.s32.totalorder %s451, %s467
      %p469 = scmp.eq.s32.totalorder %s39, 0
      %p470 = por %p468, %p469
      %p471 = scmp.le.s32.totalorder 1, %s33
      %p472 = scmp.lt.s32.totalorder %s33, 3
      %p473 = pnand %p471, %p472
      %p474 = pneg %p473
      // Predicated region
      $region9: #{forward.1} parent=5 // pred_check
        _
      $region10: #{forward.1} parent=5 // pred_check_branch
        %476 = sbr.rel (%p473) target = $region12
      $region11: #{forward.1} parent=5 // pred_region
        %s477 = ssub.s32 %s33, 1
        // Predicated region
        $region13: #{forward.1} parent=11 // pred_check
          %p478 = pneg %p80
        $region14: #{forward.1} parent=11 // pred_check_branch
          %480 = sbr.rel (%p478) target = $region16
        $region15: #{forward.1} parent=11 // pred_region
          %482 = vsyncadd [#allocation4], 0
          %s484 = sshll.u32 %s1, 4
          %s485 = int_to_ptr.hbm [resolvable:$true] %s484
          %s486 = sshll.u32 [#allocation3], 4
          %s487 = int_to_ptr.vmem [resolvable:$true] %s486
          %489 = dma.hbm_to_vmem [thread:$0]  %s485, 64, %s487, [#allocation4]
        $region16: #{forward.1} parent=11 // pred_fallthru
          _
        // Predicated region
        $region17: #{forward.1} parent=11 // pred_check
          %p490 = pneg %p101
        $region18: #{forward.1} parent=11 // pred_check_branch
          %492 = sbr.rel (%p490) target = $region20
        $region19: #{forward.1} parent=11 // pred_region
          %494 = vsyncadd [#allocation7], 0
          %s496 = sshll.u32 %s2, 4
          %s497 = int_to_ptr.hbm [resolvable:$true] %s496
          %s498 = sshll.u32 [#allocation6], 4
          %s499 = int_to_ptr.vmem [resolvable:$true] %s498
          %501 = dma.hbm_to_vmem [thread:$0]  %s497, 16, %s499, [#allocation7]
        $region20: #{forward.1} parent=11 // pred_fallthru
          _
        // Predicated region
        $region21: #{forward.1} parent=11 // pred_check
          %p502 = pneg %p122
        $region22: #{forward.1} parent=11 // pred_check_branch
          %504 = sbr.rel (%p502) target = $region24
        $region23: #{forward.1} parent=11 // pred_region
          _
        $region24: #{forward.1} parent=11 // pred_fallthru
          _
        // Predicated region
        $region25: #{forward.1} parent=11 // pred_check
          %p505 = pneg %p143
        $region26: #{forward.1} parent=11 // pred_check_branch
          %507 = sbr.rel (%p505) target = $region28
        $region27: #{forward.1} parent=11 // pred_region
          %509 = vsyncadd [#allocation7], 0
          %s511 = sshll.u32 %s4, 4
          %s512 = int_to_ptr.hbm [resolvable:$true] %s511
          %s513 = sshll.u32 [#allocation8], 4
          %s514 = int_to_ptr.vmem [resolvable:$true] %s513
          %516 = dma.hbm_to_vmem [thread:$0]  %s512, 16, %s514, [#allocation7]
        $region28: #{forward.1} parent=11 // pred_fallthru
          _
        // Predicated region
        $region29: #{forward.1} parent=11 // pred_check
          %p517 = pneg %p164
        $region30: #{forward.1} parent=11 // pred_check_branch
          %519 = sbr.rel (%p517) target = $region32
        $region31: #{forward.1} parent=11 // pred_region
          _
        $region32: #{forward.1} parent=11 // pred_fallthru
          _
        // Predicated region
        $region33: #{forward.1} parent=11 // pred_check
          %p520 = pneg %p185
        $region34: #{forward.1} parent=11 // pred_check_branch
          %522 = sbr.rel (%p520) target = $region36
        $region35: #{forward.1} parent=11 // pred_region
          _
        $region36: #{forward.1} parent=11 // pred_fallthru
          _
        // Predicated region
        $region37: #{forward.1} parent=11 // pred_check
          %p523 = pneg %p206
        $region38: #{forward.1} parent=11 // pred_check_branch
          %525 = sbr.rel (%p523) target = $region40
        $region39: #{forward.1} parent=11 // pred_region
          _
        $region40: #{forward.1} parent=11 // pred_fallthru
          _
        // Predicated region
        $region41: #{forward.1} parent=11 // pred_check
          %p526 = pneg %p227
        $region42: #{forward.1} parent=11 // pred_check_branch
          %528 = sbr.rel (%p526) target = $region44
        $region43: #{forward.1} parent=11 // pred_region
          _
        $region44: #{forward.1} parent=11 // pred_fallthru
          _
        // Predicated region
        $region45: #{forward.1} parent=11 // pred_check
          %p529 = pneg %p248
        $region46: #{forward.1} parent=11 // pred_check_branch
          %531 = sbr.rel (%p529) target = $region48
        $region47: #{forward.1} parent=11 // pred_region
          %533 = vsyncadd [#allocation10], 0
          %s534 = sshll.u32 %s9, 4
          %s535 = int_to_ptr.hbm [resolvable:$true] %s534
          %s536 = sshll.u32 [#allocation9], 4
          %s537 = int_to_ptr.vmem [resolvable:$true] %s536
          %542 = dma.hbm_to_vmem [thread:$0]  %s535, 1024, %s537, [#allocation10], 64, 64, 4
        $region48: #{forward.1} parent=11 // pred_fallthru
          _
        // Predicated region
        $region49: #{forward.1} parent=11 // pred_check
          %p543 = pneg %p269
        $region50: #{forward.1} parent=11 // pred_check_branch
          %545 = sbr.rel (%p543) target = $region52
        $region51: #{forward.1} parent=11 // pred_region
          _
        $region52: #{forward.1} parent=11 // pred_fallthru
          _
        // Predicated region
        $region53: #{forward.1} parent=11 // pred_check
          %p546 = pneg %p290
        $region54: #{forward.1} parent=11 // pred_check_branch
          %548 = sbr.rel (%p546) target = $region56
        $region55: #{forward.1} parent=11 // pred_region
          %550 = vsyncadd [#allocation10], 0
          %s551 = sshll.u32 %s11, 4
          %s552 = int_to_ptr.hbm [resolvable:$true] %s551
          %s553 = sshll.u32 [#allocation11], 4
          %s554 = int_to_ptr.vmem [resolvable:$true] %s553
          %559 = dma.hbm_to_vmem [thread:$0]  %s552, 1024, %s554, [#allocation10], 64, 64, 4
        $region56: #{forward.1} parent=11 // pred_fallthru
          _
        // Predicated region
        $region57: #{forward.1} parent=11 // pred_check
          %p560 = pneg %p311
        $region58: #{forward.1} parent=11 // pred_check_branch
          %562 = sbr.rel (%p560) target = $region60
        $region59: #{forward.1} parent=11 // pred_region
          _
        $region60: #{forward.1} parent=11 // pred_fallthru
          _
        // Predicated region
        $region61: #{forward.1} parent=11 // pred_check
          %p563 = pneg %p332
        $region62: #{forward.1} parent=11 // pred_check_branch
          %565 = sbr.rel (%p563) target = $region64
        $region63: #{forward.1} parent=11 // pred_region
          %567 = vsyncadd [#allocation13], 0
          %s568 = sshll.u32 %s13, 4
          %s569 = int_to_ptr.hbm [resolvable:$true] %s568
          %s570 = sshll.u32 [#allocation12], 4
          %s571 = int_to_ptr.vmem [resolvable:$true] %s570
          %576 = dma.hbm_to_vmem [thread:$0]  %s569, 1024, %s571, [#allocation13], 64, 64, 4
        $region64: #{forward.1} parent=11 // pred_fallthru
          _
        // Predicated region
        $region65: #{forward.1} parent=11 // pred_check
          %p577 = pneg %p353
        $region66: #{forward.1} parent=11 // pred_check_branch
          %579 = sbr.rel (%p577) target = $region68
        $region67: #{forward.1} parent=11 // pred_region
          _
        $region68: #{forward.1} parent=11 // pred_fallthru
          _
        // Predicated region
        $region69: #{forward.1} parent=11 // pred_check
          %p580 = pneg %p374
        $region70: #{forward.1} parent=11 // pred_check_branch
          %582 = sbr.rel (%p580) target = $region72
        $region71: #{forward.1} parent=11 // pred_region
          %584 = vsyncadd [#allocation13], 0
          %s585 = sshll.u32 %s15, 4
          %s586 = int_to_ptr.hbm [resolvable:$true] %s585
          %s587 = sshll.u32 [#allocation14], 4
          %s588 = int_to_ptr.vmem [resolvable:$true] %s587
          %593 = dma.hbm_to_vmem [thread:$0]  %s586, 1024, %s588, [#allocation13], 64, 64, 4
        $region72: #{forward.1} parent=11 // pred_fallthru
          _
        // Predicated region
        $region73: #{forward.1} parent=11 // pred_check
          %p594 = pneg %p395
        $region74: #{forward.1} parent=11 // pred_check_branch
          %596 = sbr.rel (%p594) target = $region76
        $region75: #{forward.1} parent=11 // pred_region
          _
        $region76: #{forward.1} parent=11 // pred_fallthru
          _
        // Predicated region
        $region77: #{forward.1} parent=11 // pred_check
          %p597 = pneg %p416
        $region78: #{forward.1} parent=11 // pred_check_branch
          %599 = sbr.rel (%p597) target = $region80
        $region79: #{forward.1} parent=11 // pred_region
          %601 = vsyncadd [#allocation16], 0
          %s602 = sshll.u32 %s17, 4
          %s603 = int_to_ptr.hbm [resolvable:$true] %s602
          %s604 = sshll.u32 [#allocation15], 4
          %s605 = int_to_ptr.vmem [resolvable:$true] %s604
          %610 = dma.hbm_to_vmem [thread:$0]  %s603, 1024, %s605, [#allocation16], 64, 64, 4
        $region80: #{forward.1} parent=11 // pred_fallthru
          _
        // Predicated region
        $region81: #{forward.1} parent=11 // pred_check
          %p611 = pneg %p437
        $region82: #{forward.1} parent=11 // pred_check_branch
          %613 = sbr.rel (%p611) target = $region84
        $region83: #{forward.1} parent=11 // pred_region
          _
        $region84: #{forward.1} parent=11 // pred_fallthru
          _
      $region12: #{forward.1} parent=5 // pred_fallthru
        _
      %p614 = scmp.lt.s32.totalorder %s33, 2
      // Predicated region
      $region85: #{forward.1} parent=5 // pred_check
        %p615 = pneg %p614
      $region86: #{forward.1} parent=5 // pred_check_branch
        %617 = sbr.rel (%p615) target = $region88
      $region87: #{forward.1} parent=5 // pred_region
        // Predicated region
        $region89: #{forward.1} parent=87 // pred_check
          %p618 = pneg %p53
        $region90: #{forward.1} parent=87 // pred_check_branch
          %620 = sbr.rel (%p618) target = $region92
        $region91: #{forward.1} parent=87 // pred_region
          %s621 = smul.u32 4, %s33
          %p622 = scmp.lt.s32.totalorder %s621, 7
          %s623 = scalar_select %p622, %s621, 7
          %s624 = smul.addr %s623, 2
          %s625 = smul.addr %s624, 8
          %s626 = scalar_lea.vmem %s0, %s625
          %s627 = smul.u32 4, %s33
        $region92: #{forward.1} parent=87 // pred_fallthru
          _
      $region88: #{forward.1} parent=5 // pred_fallthru
        _
      %p628 = scmp.le.s32.totalorder 1, %s33
      %p629 = scmp.lt.s32.totalorder %s33, 3
      %p630 = pnand %p628, %p629
      %p631 = pneg %p630
      // Predicated region
      $region93: #{forward.1} parent=5 // pred_check
        _
      $region94: #{forward.1} parent=5 // pred_check_branch
        %633 = sbr.rel (%p630) target = $region96
      $region95: #{forward.1} parent=5 // pred_region
        %s634 = ssub.s32 %s33, 1
        // Predicated region
        $region97: #{forward.1} parent=95 // pred_check
          %p635 = pneg %p80
        $region98: #{forward.1} parent=95 // pred_check_branch
          %637 = sbr.rel (%p635) target = $region100
        $region99: #{forward.1} parent=95 // pred_region
          %639 = dma.done [#allocation4], 64
        $region100: #{forward.1} parent=95 // pred_fallthru
          _
        // Predicated region
        $region101: #{forward.1} parent=95 // pred_check
          %p640 = pneg %p101
        $region102: #{forward.1} parent=95 // pred_check_branch
          %642 = sbr.rel (%p640) target = $region104
        $region103: #{forward.1} parent=95 // pred_region
          %644 = dma.done [#allocation7], 16
        $region104: #{forward.1} parent=95 // pred_fallthru
          _
        // Predicated region
        $region105: #{forward.1} parent=95 // pred_check
          %p645 = pneg %p143
        $region106: #{forward.1} parent=95 // pred_check_branch
          %647 = sbr.rel (%p645) target = $region108
        $region107: #{forward.1} parent=95 // pred_region
          %649 = dma.done [#allocation7], 16
        $region108: #{forward.1} parent=95 // pred_fallthru
          _
        // Predicated region
        $region109: #{forward.1} parent=95 // pred_check
          %p650 = pneg %p248
        $region110: #{forward.1} parent=95 // pred_check_branch
          %652 = sbr.rel (%p650) target = $region112
        $region111: #{forward.1} parent=95 // pred_region
          %654 = dma.done [#allocation10], 1024
        $region112: #{forward.1} parent=95 // pred_fallthru
          _
        // Predicated region
        $region113: #{forward.1} parent=95 // pred_check
          %p655 = pneg %p290
        $region114: #{forward.1} parent=95 // pred_check_branch
          %657 = sbr.rel (%p655) target = $region116
        $region115: #{forward.1} parent=95 // pred_region
          %659 = dma.done [#allocation10], 1024
        $region116: #{forward.1} parent=95 // pred_fallthru
          _
        // Predicated region
        $region117: #{forward.1} parent=95 // pred_check
          %p660 = pneg %p332
        $region118: #{forward.1} parent=95 // pred_check_branch
          %662 = sbr.rel (%p660) target = $region120
        $region119: #{forward.1} parent=95 // pred_region
          %664 = dma.done [#allocation13], 1024
        $region120: #{forward.1} parent=95 // pred_fallthru
          _
        // Predicated region
        $region121: #{forward.1} parent=95 // pred_check
          %p665 = pneg %p374
        $region122: #{forward.1} parent=95 // pred_check_branch
          %667 = sbr.rel (%p665) target = $region124
        $region123: #{forward.1} parent=95 // pred_region
          %669 = dma.done [#allocation13], 1024
        $region124: #{forward.1} parent=95 // pred_fallthru
          _
        // Predicated region
        $region125: #{forward.1} parent=95 // pred_check
          %p670 = pneg %p416
        $region126: #{forward.1} parent=95 // pred_check_branch
          %672 = sbr.rel (%p670) target = $region128
        $region127: #{forward.1} parent=95 // pred_region
          %674 = dma.done [#allocation16], 1024
        $region128: #{forward.1} parent=95 // pred_fallthru
          _
        %s675 = smul.u32 4, %s38
        %p676 = scmp.lt.s32.totalorder %s675, 7
        %s677 = scalar_select %p676, %s675, 7
        %s678 = smul.addr %s677, 2
        %s679 = smul.addr %s678, 8
        %s680 = scalar_lea.vmem %s0, %s679
        %p681 = pneg %p59
        %p682 = pneg %p56
        %p683 = pneg %p80
        %p684 = pneg %p77
        %p685 = pneg %p101
        %p686 = pneg %p98
        %p687 = pneg %p122
        %p688 = pneg %p119
        %p689 = pneg %p143
        %p690 = pneg %p140
        %p691 = pneg %p164
        %p692 = pneg %p161
        %p693 = pneg %p185
        %p694 = pneg %p182
        %p695 = pneg %p206
        %p696 = pneg %p203
        %p697 = pneg %p227
        %p698 = pneg %p224
        %p699 = pneg %p248
        %p700 = pneg %p245
        %p701 = pneg %p269
        %p702 = pneg %p266
        %p703 = pneg %p290
        %p704 = pneg %p287
        %p705 = pneg %p311
        %p706 = pneg %p308
        %p707 = pneg %p332
        %p708 = pneg %p329
        %p709 = pneg %p353
        %p710 = pneg %p350
        %p711 = pneg %p374
        %p712 = pneg %p371
        %p713 = pneg %p395
        %p714 = pneg %p392
        %p715 = pneg %p416
        %p716 = pneg %p413
        %p717 = pneg %p437
        %p718 = pneg %p434
        %p719 = pneg %p463
        %p720 = pneg %p460
        %s721 = sand.u32 %s450, 1
        %s722 = scalar_lea.sflag [#allocation5], %s721
        %s723 = sand.u32 %s450, 1
        %s724 = smul.addr %s723, 64
        %s725 = scalar_lea.vmem [#allocation17], %s724
        %s726 = smul.u32 4, %s38
        %p727 = scmp.lt.s32.totalorder %s726, 7
        %s728 = scalar_select %p727, %s726, 7
        %s729 = smul.addr %s728, 2
        %s730 = smul.addr %s729, 8
        %s731 = scalar_lea.vmem %s0, %s730
        %s732 = smul.u32 4, %s38
        %s733 = smul.u32 4, %s38
        %735 = vst [vmem:[#allocation2] sm:$0xff] 0.0
        %736 = vst [vmem:[#allocation2 + $0x18] sm:$0xff] 0.0
        %737 = vst [vmem:[#allocation2 + $0x30] sm:$0xff] 0.0
        %738 = vst [vmem:[#allocation2 + $0x48] sm:$0xff] 0.0
        %v739 = vld [vmem:[%s731] sm:$0xff]
        %v740 = vld [vmem:[%s731 + $0x8] sm:$0xff]
        %v741 = vld [vmem:[%s731 + $0x10] sm:$0xff]
        %v742 = vld [vmem:[%s731 + $0x18] sm:$0xff]
        %v743 = vld [vmem:[%s731 + $0x20] sm:$0xff]
        %v744 = vld [vmem:[%s731 + $0x28] sm:$0xff]
        %v745 = vld [vmem:[%s731 + $0x30] sm:$0xff]
        %v746 = vld [vmem:[%s731 + $0x38] sm:$0xff]
        %vm747 = vcmp.ne.f32.partialorder %v739, %v739
        %vm748 = vcmp.ne.f32.partialorder %v740, %v740
        %vm749 = vcmp.ne.f32.partialorder %v741, %v741
        %vm750 = vcmp.ne.f32.partialorder %v742, %v742
        %vm751 = vcmp.ne.f32.partialorder %v743, %v743
        %vm752 = vcmp.ne.f32.partialorder %v744, %v744
        %vm753 = vcmp.ne.f32.partialorder %v745, %v745
        %vm754 = vcmp.ne.f32.partialorder %v746, %v746
        %v755 = vsel %vm747, 1.0, 0.0
        %v756 = vsel %vm748, 1.0, 0.0
        %v757 = vsel %vm749, 1.0, 0.0
        %v758 = vsel %vm750, 1.0, 0.0
        %v759 = vsel %vm751, 1.0, 0.0
        %v760 = vsel %vm752, 1.0, 0.0
        %v761 = vsel %vm753, 1.0, 0.0
        %v762 = vsel %vm754, 1.0, 0.0
        %vm763 = vcmask 64512
        %v764 = vsel %vm763, %v755, -inf
        %765 = vmax.xlane.f32.xlu0 %v764
        %v766 = vpop.xlane.xlu0 %765
        %v767 = vsel %vm763, %v756, -inf
        %768 = vmax.xlane.f32.xlu0 %v767
        %v769 = vpop.xlane.xlu0 %768
        %v770 = vsel %vm763, %v757, -inf
        %771 = vmax.xlane.f32.xlu0 %v770
        %v772 = vpop.xlane.xlu0 %771
        %v773 = vsel %vm763, %v758, -inf
        %774 = vmax.xlane.f32.xlu0 %v773
        %v775 = vpop.xlane.xlu0 %774
        %v776 = vsel %vm763, %v759, -inf
        %777 = vmax.xlane.f32.xlu0 %v776
        %v778 = vpop.xlane.xlu0 %777
        %v779 = vsel %vm763, %v760, -inf
        %780 = vmax.xlane.f32.xlu0 %v779
        %v781 = vpop.xlane.xlu0 %780
        %v782 = vsel %vm763, %v761, -inf
        %783 = vmax.xlane.f32.xlu0 %v782
        %v784 = vpop.xlane.xlu0 %783
        %v785 = vsel %vm763, %v762, -inf
        %786 = vmax.xlane.f32.xlu0 %v785
        %v787 = vpop.xlane.xlu0 %786
        %vm788 = vcmp.gt.f32.partialorder %v766, 0.0
        %vm789 = vcmp.gt.f32.partialorder %v769, 0.0
        %vm790 = vcmp.gt.f32.partialorder %v772, 0.0
        %vm791 = vcmp.gt.f32.partialorder %v775, 0.0
        %vm792 = vcmp.gt.f32.partialorder %v778, 0.0
        %vm793 = vcmp.gt.f32.partialorder %v781, 0.0
        %vm794 = vcmp.gt.f32.partialorder %v784, 0.0
        %vm795 = vcmp.gt.f32.partialorder %v787, 0.0
        %vm796 = vmxor %vm788, 1
        %vm797 = vmxor %vm789, 1
        %vm798 = vmxor %vm790, 1
        %vm799 = vmxor %vm791, 1
        %vm800 = vmxor %vm792, 1
        %vm801 = vmxor %vm793, 1
        %vm802 = vmxor %vm794, 1
        %vm803 = vmxor %vm795, 1
        %v804 = vsel %vm796, 1, 0
        %v805 = vsel %vm797, 1, 0
        %v806 = vsel %vm798, 1, 0
        %v807 = vsel %vm799, 1, 0
        %v808 = vsel %vm800, 1, 0
        %v809 = vsel %vm801, 1, 0
        %v810 = vsel %vm802, 1, 0
        %v811 = vsel %vm803, 1, 0
        %vm812 = vcmp.eq.s32.totalorder %v804, 1
        %vm813 = vcmp.eq.s32.totalorder %v805, 1
        %vm814 = vcmp.eq.s32.totalorder %v806, 1
        %vm815 = vcmp.eq.s32.totalorder %v807, 1
        %vm816 = vcmp.eq.s32.totalorder %v808, 1
        %vm817 = vcmp.eq.s32.totalorder %v809, 1
        %vm818 = vcmp.eq.s32.totalorder %v810, 1
        %vm819 = vcmp.eq.s32.totalorder %v811, 1
        %v820 = vsel %vm812, %v739, 0.0
        %v821 = vsel %vm813, %v740, 0.0
        %v822 = vsel %vm814, %v741, 0.0
        %v823 = vsel %vm815, %v742, 0.0
        %v824 = vsel %vm816, %v743, 0.0
        %v825 = vsel %vm817, %v744, 0.0
        %v826 = vsel %vm818, %v745, 0.0
        %v827 = vsel %vm819, %v746, 0.0
        %v828 = vpack.c.bf16 %v821, %v820
        %v829 = vpack.c.bf16 %v823, %v822
        %v830 = vpack.c.bf16 %v825, %v824
        %v831 = vpack.c.bf16 %v827, %v826
        %v832 = vld [vmem:[#allocation3] sm:$0xf]
        %v833 = vld [vmem:[#allocation6] sm:$0x1]
        %v835 = vperm.slane %v833, 0
        %v838 = vsel %vm763, %v828, 0
        %v841 = vsel %vm763, %v829, 0
        %v844 = vsel %vm763, %v830, 0
        %v847 = vsel %vm763, %v831, 0
        %vm849 = vcmask 1043456
        %v851 = vsel %vm849, %v832, 0
        %853 = vmatpush.bf16.msra.mxu0 0
        %854 = vmatpush.bf16.msra.mxu0 0
        %855 = vmatpush.bf16.msra.mxu0 0
        %856 = vmatpush.bf16.msra.mxu0 0
        %857 = vmatpush.bf16.msra.mxu0 0
        %858 = vmatpush.bf16.msra.mxu0 0
        %859 = vmatpush.bf16.msra.mxu0 0
        %860 = vmatpush.bf16.msra.mxu0 %v851
        %861 = vmatmul.bf16.gmra.mxu0 %v838
        %v862 = vpop.f32.mrf.mxu0
        %v863 = vadd.f32 %v835, %v862
        %v864 = vpop.f32.mrf.mxu0
        %v865 = vadd.f32 %v835, %v864
        %866 = vmatmul.bf16.gmra.mxu0 %v841
        %v867 = vpop.f32.mrf.mxu0
        %v868 = vadd.f32 %v835, %v867
        %v869 = vpop.f32.mrf.mxu0
        %v870 = vadd.f32 %v835, %v869
        %871 = vmatmul.bf16.gmra.mxu0 %v844
        %v872 = vpop.f32.mrf.mxu0
        %v873 = vadd.f32 %v835, %v872
        %v874 = vpop.f32.mrf.mxu0
        %v875 = vadd.f32 %v835, %v874
        %876 = vmatmul.bf16.gmra.mxu0 %v847
        %v877 = vpop.f32.mrf.mxu0
        %v878 = vadd.f32 %v835, %v877
        %v879 = vpop.f32.mrf.mxu0
        %v880 = vadd.f32 %v835, %v879
        %881 = vdwg.mxu0
        %v882 = vsel %vm812, %v863, 0.0
        %v883 = vsel %vm813, %v865, 0.0
        %v884 = vsel %vm814, %v868, 0.0
        %v885 = vsel %vm815, %v870, 0.0
        %v886 = vsel %vm816, %v873, 0.0
        %v887 = vsel %vm817, %v875, 0.0
        %v888 = vsel %vm818, %v878, 0.0
        %v889 = vsel %vm819, %v880, 0.0
        %890 = vst [vmem:[#allocation2 + $0x8] sm:$0xff] %v882
        %891 = vst [vmem:[#allocation2 + $0x10] sm:$0xff] %v883
        %892 = vst [vmem:[#allocation2 + $0x20] sm:$0xff] %v884
        %893 = vst [vmem:[#allocation2 + $0x28] sm:$0xff] %v885
        %894 = vst [vmem:[#allocation2 + $0x38] sm:$0xff] %v886
        %895 = vst [vmem:[#allocation2 + $0x40] sm:$0xff] %v887
        %896 = vst [vmem:[#allocation2 + $0x50] sm:$0xff] %v888
        %897 = vst [vmem:[#allocation2 + $0x58] sm:$0xff] %v889
        %v898 = vld [vmem:[#allocation2 + $0x6] sm:$0xff]
        %v899 = vld [vmem:[#allocation2 + $0xe] sm:$0xff]
        %v900 = vld [vmem:[#allocation2 + $0x1e] sm:$0xff]
        %v901 = vld [vmem:[#allocation2 + $0x26] sm:$0xff]
        %v902 = vld [vmem:[#allocation2 + $0x36] sm:$0xff]
        %v903 = vld [vmem:[#allocation2 + $0x3e] sm:$0xff]
        %v904 = vld [vmem:[#allocation2 + $0x4e] sm:$0xff]
        %v905 = vld [vmem:[#allocation2 + $0x56] sm:$0xff]
        %v906 = vld [vmem:[#allocation2 + $0x7] sm:$0xff]
        %v907 = vld [vmem:[#allocation2 + $0xf] sm:$0xff]
        %v908 = vld [vmem:[#allocation2 + $0x1f] sm:$0xff]
        %v909 = vld [vmem:[#allocation2 + $0x27] sm:$0xff]
        %v910 = vld [vmem:[#allocation2 + $0x37] sm:$0xff]
        %v911 = vld [vmem:[#allocation2 + $0x3f] sm:$0xff]
        %v912 = vld [vmem:[#allocation2 + $0x4f] sm:$0xff]
        %v913 = vld [vmem:[#allocation2 + $0x57] sm:$0xff]
        %914 = vrot.lane.b32.xlu0 %v906, 32
        %v915 = vpop.permute.xlu0 %914
        %916 = vrot.lane.b32.xlu0 %v907, 32
        %v917 = vpop.permute.xlu0 %916
        %918 = vrot.lane.b32.xlu0 %v908, 32
        %v919 = vpop.permute.xlu0 %918
        %920 = vrot.lane.b32.xlu0 %v909, 32
        %v921 = vpop.permute.xlu0 %920
        %922 = vrot.lane.b32.xlu0 %v910, 32
        %v923 = vpop.permute.xlu0 %922
        %924 = vrot.lane.b32.xlu0 %v911, 32
        %v925 = vpop.permute.xlu0 %924
        %926 = vrot.lane.b32.xlu0 %v912, 32
        %v927 = vpop.permute.xlu0 %926
        %928 = vrot.lane.b32.xlu0 %v913, 32
        %v929 = vpop.permute.xlu0 %928
        %v930 = vadd.f32 %v898, %v915
        %v931 = vadd.f32 %v899, %v917
        %v932 = vadd.f32 %v900, %v919
        %v933 = vadd.f32 %v901, %v921
        %v934 = vadd.f32 %v902, %v923
        %v935 = vadd.f32 %v903, %v925
        %v936 = vadd.f32 %v904, %v927
        %v937 = vadd.f32 %v905, %v929
        %938 = vrot.lane.b32.xlu0 %v882, 64
        %v939 = vpop.permute.xlu0 %938
        %940 = vrot.lane.b32.xlu0 %v883, 64
        %v941 = vpop.permute.xlu0 %940
        %942 = vrot.lane.b32.xlu0 %v884, 64
        %v943 = vpop.permute.xlu0 %942
        %944 = vrot.lane.b32.xlu0 %v885, 64
        %v945 = vpop.permute.xlu0 %944
        %946 = vrot.lane.b32.xlu0 %v886, 64
        %v947 = vpop.permute.xlu0 %946
        %948 = vrot.lane.b32.xlu0 %v887, 64
        %v949 = vpop.permute.xlu0 %948
        %950 = vrot.lane.b32.xlu0 %v888, 64
        %v951 = vpop.permute.xlu0 %950
        %952 = vrot.lane.b32.xlu0 %v889, 64
        %v953 = vpop.permute.xlu0 %952
        %v954 = vadd.f32 %v930, %v939
        %v955 = vadd.f32 %v931, %v941
        %v956 = vadd.f32 %v932, %v943
        %v957 = vadd.f32 %v933, %v945
        %v958 = vadd.f32 %v934, %v947
        %v959 = vadd.f32 %v935, %v949
        %v960 = vadd.f32 %v936, %v951
        %v961 = vadd.f32 %v937, %v953
        %v962 = vpack.c.bf16 %v955, %v954
        %v963 = vpack.c.bf16 %v957, %v956
        %v964 = vpack.c.bf16 %v959, %v958
        %v965 = vpack.c.bf16 %v961, %v960
        %v966 = vld [vmem:[%s3] sm:$0xf]
        %v967 = vld [vmem:[%s3 + $0x4] sm:$0xf]
        %v968 = vld [vmem:[%s3 + $0x8] sm:$0xf]
        %v969 = vld [vmem:[%s3 + $0xc] sm:$0xf]
        %v970 = vld [vmem:[%s3 + $0x10] sm:$0xf]
        %v971 = vld [vmem:[%s3 + $0x14] sm:$0xf]
        %v972 = vld [vmem:[%s3 + $0x18] sm:$0xf]
        %v973 = vld [vmem:[%s3 + $0x1c] sm:$0xf]
        %v974 = vld [vmem:[%s3 + $0x20] sm:$0xf]
        %v975 = vld [vmem:[%s3 + $0x24] sm:$0xf]
        %v976 = vld [vmem:[%s3 + $0x28] sm:$0xf]
        %v977 = vld [vmem:[%s3 + $0x2c] sm:$0xf]
        %v978 = vld [vmem:[%s3 + $0x30] sm:$0xf]
        %v979 = vld [vmem:[%s3 + $0x34] sm:$0xf]
        %v980 = vld [vmem:[%s3 + $0x38] sm:$0xf]
        %v981 = vld [vmem:[%s3 + $0x3c] sm:$0xf]
        %v982 = vld [vmem:[#allocation8] sm:$0x1]
        %v984 = vperm.slane %v982, 0
        %v1002 = vunpack.c.l.b16 %v966
        %v1003 = vunpack.c.l.b16 %v967
        %v1004 = vunpack.c.l.b16 %v968
        %v1005 = vunpack.c.l.b16 %v969
        %v1006 = vunpack.c.l.b16 %v970
        %v1007 = vunpack.c.l.b16 %v971
        %v1008 = vunpack.c.l.b16 %v972
        %v1009 = vunpack.c.l.b16 %v973
        %v1010 = vunpack.c.l.b16 %v974
        %v1011 = vunpack.c.l.b16 %v975
        %v1012 = vunpack.c.l.b16 %v976
        %v1013 = vunpack.c.l.b16 %v977
        %v1014 = vunpack.c.l.b16 %v978
        %v1015 = vunpack.c.l.b16 %v979
        %v1016 = vunpack.c.l.b16 %v980
        %v1017 = vunpack.c.l.b16 %v981
        %v1018 = vpack.c.b16 %v1003, %v1002
        %v1019 = vpack.c.b16 %v1005, %v1004
        %v1020 = vpack.c.b16 %v1007, %v1006
        %v1021 = vpack.c.b16 %v1009, %v1008
        %v1022 = vpack.c.b16 %v1011, %v1010
        %v1023 = vpack.c.b16 %v1013, %v1012
        %v1024 = vpack.c.b16 %v1015, %v1014
        %v1025 = vpack.c.b16 %v1017, %v1016
        %1034 = vmatpush.bf16.msra.mxu0 %v1025
        %1035 = vmatpush.bf16.msra.mxu0 %v1024
        %1036 = vmatpush.bf16.msra.mxu0 %v1023
        %1037 = vmatpush.bf16.msra.mxu0 %v1022
        %1038 = vmatpush.bf16.msra.mxu0 %v1021
        %1039 = vmatpush.bf16.msra.mxu0 %v1020
        %1040 = vmatpush.bf16.msra.mxu0 %v1019
        %1041 = vmatpush.bf16.msra.mxu0 %v1018
        %1042 = vmatmul.bf16.gmra.mxu0 %v962
        %v1043 = vpop.f32.mrf.mxu0
        %v1044 = vadd.f32 %v984, %v1043
        %v1045 = vpop.f32.mrf.mxu0
        %v1046 = vadd.f32 %v984, %v1045
        %1047 = vmatmul.bf16.gmra.mxu0 %v963
        %v1048 = vpop.f32.mrf.mxu0
        %v1049 = vadd.f32 %v984, %v1048
        %v1050 = vpop.f32.mrf.mxu0
        %v1051 = vadd.f32 %v984, %v1050
        %1052 = vmatmul.bf16.gmra.mxu0 %v964
        %v1053 = vpop.f32.mrf.mxu0
        %v1054 = vadd.f32 %v984, %v1053
        %v1055 = vpop.f32.mrf.mxu0
        %v1056 = vadd.f32 %v984, %v1055
        %1057 = vmatmul.bf16.gmra.mxu0 %v965
        %v1058 = vpop.f32.mrf.mxu0
        %v1059 = vadd.f32 %v984, %v1058
        %v1060 = vpop.f32.mrf.mxu0
        %v1061 = vadd.f32 %v984, %v1060
        %1062 = vdwg.mxu0
        %v1063 = vmax.f32 %v1044, 0.0
        %v1064 = vmax.f32 %v1046, 0.0
        %v1065 = vmax.f32 %v1049, 0.0
        %v1066 = vmax.f32 %v1051, 0.0
        %v1067 = vmax.f32 %v1054, 0.0
        %v1068 = vmax.f32 %v1056, 0.0
        %v1069 = vmax.f32 %v1059, 0.0
        %v1070 = vmax.f32 %v1061, 0.0
        %1071 = vst [vmem:[#allocation2 + $0x8] sm:$0xff] %v1063
        %1072 = vst [vmem:[#allocation2 + $0x10] sm:$0xff] %v1064
        %1073 = vst [vmem:[#allocation2 + $0x20] sm:$0xff] %v1065
        %1074 = vst [vmem:[#allocation2 + $0x28] sm:$0xff] %v1066
        %1075 = vst [vmem:[#allocation2 + $0x38] sm:$0xff] %v1067
        %1076 = vst [vmem:[#allocation2 + $0x40] sm:$0xff] %v1068
        %1077 = vst [vmem:[#allocation2 + $0x50] sm:$0xff] %v1069
        %1078 = vst [vmem:[#allocation2 + $0x58] sm:$0xff] %v1070
        %v1079 = vld [vmem:[#allocation2 + $0x6] sm:$0xff]
        %v1080 = vld [vmem:[#allocation2 + $0xe] sm:$0xff]
        %v1081 = vld [vmem:[#allocation2 + $0x1e] sm:$0xff]
        %v1082 = vld [vmem:[#allocation2 + $0x26] sm:$0xff]
        %v1083 = vld [vmem:[#allocation2 + $0x36] sm:$0xff]
        %v1084 = vld [vmem:[#allocation2 + $0x3e] sm:$0xff]
        %v1085 = vld [vmem:[#allocation2 + $0x4e] sm:$0xff]
        %v1086 = vld [vmem:[#allocation2 + $0x56] sm:$0xff]
        %v1087 = vld [vmem:[#allocation2 + $0x7] sm:$0xff]
        %v1088 = vld [vmem:[#allocation2 + $0xf] sm:$0xff]
        %v1089 = vld [vmem:[#allocation2 + $0x1f] sm:$0xff]
        %v1090 = vld [vmem:[#allocation2 + $0x27] sm:$0xff]
        %v1091 = vld [vmem:[#allocation2 + $0x37] sm:$0xff]
        %v1092 = vld [vmem:[#allocation2 + $0x3f] sm:$0xff]
        %v1093 = vld [vmem:[#allocation2 + $0x4f] sm:$0xff]
        %v1094 = vld [vmem:[#allocation2 + $0x57] sm:$0xff]
        %1095 = vrot.lane.b32.xlu0 %v1087, 32
        %v1096 = vpop.permute.xlu0 %1095
        %1097 = vrot.lane.b32.xlu0 %v1088, 32
        %v1098 = vpop.permute.xlu0 %1097
        %1099 = vrot.lane.b32.xlu0 %v1089, 32
        %v1100 = vpop.permute.xlu0 %1099
        %1101 = vrot.lane.b32.xlu0 %v1090, 32
        %v1102 = vpop.permute.xlu0 %1101
        %1103 = vrot.lane.b32.xlu0 %v1091, 32
        %v1104 = vpop.permute.xlu0 %1103
        %1105 = vrot.lane.b32.xlu0 %v1092, 32
        %v1106 = vpop.permute.xlu0 %1105
        %1107 = vrot.lane.b32.xlu0 %v1093, 32
        %v1108 = vpop.permute.xlu0 %1107
        %1109 = vrot.lane.b32.xlu0 %v1094, 32
        %v1110 = vpop.permute.xlu0 %1109
        %v1111 = vadd.f32 %v1079, %v1096
        %v1112 = vadd.f32 %v1080, %v1098
        %v1113 = vadd.f32 %v1081, %v1100
        %v1114 = vadd.f32 %v1082, %v1102
        %v1115 = vadd.f32 %v1083, %v1104
        %v1116 = vadd.f32 %v1084, %v1106
        %v1117 = vadd.f32 %v1085, %v1108
        %v1118 = vadd.f32 %v1086, %v1110
        %1119 = vrot.lane.b32.xlu0 %v1063, 64
        %v1120 = vpop.permute.xlu0 %1119
        %1121 = vrot.lane.b32.xlu0 %v1064, 64
        %v1122 = vpop.permute.xlu0 %1121
        %1123 = vrot.lane.b32.xlu0 %v1065, 64
        %v1124 = vpop.permute.xlu0 %1123
        %1125 = vrot.lane.b32.xlu0 %v1066, 64
        %v1126 = vpop.permute.xlu0 %1125
        %1127 = vrot.lane.b32.xlu0 %v1067, 64
        %v1128 = vpop.permute.xlu0 %1127
        %1129 = vrot.lane.b32.xlu0 %v1068, 64
        %v1130 = vpop.permute.xlu0 %1129
        %1131 = vrot.lane.b32.xlu0 %v1069, 64
        %v1132 = vpop.permute.xlu0 %1131
        %1133 = vrot.lane.b32.xlu0 %v1070, 64
        %v1134 = vpop.permute.xlu0 %1133
        %v1135 = vadd.f32 %v1111, %v1120
        %v1136 = vadd.f32 %v1112, %v1122
        %v1137 = vadd.f32 %v1113, %v1124
        %v1138 = vadd.f32 %v1114, %v1126
        %v1139 = vadd.f32 %v1115, %v1128
        %v1140 = vadd.f32 %v1116, %v1130
        %v1141 = vadd.f32 %v1117, %v1132
        %v1142 = vadd.f32 %v1118, %v1134
        %v1143 = vpack.c.bf16 %v1136, %v1135
        %v1144 = vpack.c.bf16 %v1138, %v1137
        %v1145 = vpack.c.bf16 %v1140, %v1139
        %v1146 = vpack.c.bf16 %v1142, %v1141
        %v1147 = vld [vmem:[%s5] sm:$0xf]
        %v1148 = vld [vmem:[%s5 + $0x4] sm:$0xf]
        %v1149 = vld [vmem:[%s5 + $0x8] sm:$0xf]
        %v1150 = vld [vmem:[%s5 + $0xc] sm:$0xf]
        %v1151 = vld [vmem:[%s5 + $0x10] sm:$0xf]
        %v1152 = vld [vmem:[%s5 + $0x14] sm:$0xf]
        %v1153 = vld [vmem:[%s5 + $0x18] sm:$0xf]
        %v1154 = vld [vmem:[%s5 + $0x1c] sm:$0xf]
        %v1155 = vld [vmem:[%s5 + $0x20] sm:$0xf]
        %v1156 = vld [vmem:[%s5 + $0x24] sm:$0xf]
        %v1157 = vld [vmem:[%s5 + $0x28] sm:$0xf]
        %v1158 = vld [vmem:[%s5 + $0x2c] sm:$0xf]
        %v1159 = vld [vmem:[%s5 + $0x30] sm:$0xf]
        %v1160 = vld [vmem:[%s5 + $0x34] sm:$0xf]
        %v1161 = vld [vmem:[%s5 + $0x38] sm:$0xf]
        %v1162 = vld [vmem:[%s5 + $0x3c] sm:$0xf]
        %v1163 = vld [vmem:[%s6] sm:$0x1]
        %v1165 = vperm.slane %v1163, 0
        %v1183 = vunpack.c.l.b16 %v1147
        %v1184 = vunpack.c.l.b16 %v1148
        %v1185 = vunpack.c.l.b16 %v1149
        %v1186 = vunpack.c.l.b16 %v1150
        %v1187 = vunpack.c.l.b16 %v1151
        %v1188 = vunpack.c.l.b16 %v1152
        %v1189 = vunpack.c.l.b16 %v1153
        %v1190 = vunpack.c.l.b16 %v1154
        %v1191 = vunpack.c.l.b16 %v1155
        %v1192 = vunpack.c.l.b16 %v1156
        %v1193 = vunpack.c.l.b16 %v1157
        %v1194 = vunpack.c.l.b16 %v1158
        %v1195 = vunpack.c.l.b16 %v1159
        %v1196 = vunpack.c.l.b16 %v1160
        %v1197 = vunpack.c.l.b16 %v1161
        %v1198 = vunpack.c.l.b16 %v1162
        %v1199 = vpack.c.b16 %v1184, %v1183
        %v1200 = vpack.c.b16 %v1186, %v1185
        %v1201 = vpack.c.b16 %v1188, %v1187
        %v1202 = vpack.c.b16 %v1190, %v1189
        %v1203 = vpack.c.b16 %v1192, %v1191
        %v1204 = vpack.c.b16 %v1194, %v1193
        %v1205 = vpack.c.b16 %v1196, %v1195
        %v1206 = vpack.c.b16 %v1198, %v1197
        %1215 = vmatpush.bf16.msra.mxu0 %v1206
        %1216 = vmatpush.bf16.msra.mxu0 %v1205
        %1217 = vmatpush.bf16.msra.mxu0 %v1204
        %1218 = vmatpush.bf16.msra.mxu0 %v1203
        %1219 = vmatpush.bf16.msra.mxu0 %v1202
        %1220 = vmatpush.bf16.msra.mxu0 %v1201
        %1221 = vmatpush.bf16.msra.mxu0 %v1200
        %1222 = vmatpush.bf16.msra.mxu0 %v1199
        %1223 = vmatmul.bf16.gmra.mxu0 %v1143
        %v1224 = vpop.f32.mrf.mxu0
        %v1225 = vadd.f32 %v1165, %v1224
        %v1226 = vpop.f32.mrf.mxu0
        %v1227 = vadd.f32 %v1165, %v1226
        %1228 = vmatmul.bf16.gmra.mxu0 %v1144
        %v1229 = vpop.f32.mrf.mxu0
        %v1230 = vadd.f32 %v1165, %v1229
        %v1231 = vpop.f32.mrf.mxu0
        %v1232 = vadd.f32 %v1165, %v1231
        %1233 = vmatmul.bf16.gmra.mxu0 %v1145
        %v1234 = vpop.f32.mrf.mxu0
        %v1235 = vadd.f32 %v1165, %v1234
        %v1236 = vpop.f32.mrf.mxu0
        %v1237 = vadd.f32 %v1165, %v1236
        %1238 = vmatmul.bf16.gmra.mxu0 %v1146
        %v1239 = vpop.f32.mrf.mxu0
        %v1240 = vadd.f32 %v1165, %v1239
        %v1241 = vpop.f32.mrf.mxu0
        %v1242 = vadd.f32 %v1165, %v1241
        %1243 = vdwg.mxu0
        %v1244 = vmax.f32 %v1225, 0.0
        %v1245 = vmax.f32 %v1227, 0.0
        %v1246 = vmax.f32 %v1230, 0.0
        %v1247 = vmax.f32 %v1232, 0.0
        %v1248 = vmax.f32 %v1235, 0.0
        %v1249 = vmax.f32 %v1237, 0.0
        %v1250 = vmax.f32 %v1240, 0.0
        %v1251 = vmax.f32 %v1242, 0.0
        %v1252 = vadd.f32 %v1244, %v882
        %v1253 = vadd.f32 %v1245, %v883
        %v1254 = vadd.f32 %v1246, %v884
        %v1255 = vadd.f32 %v1247, %v885
        %v1256 = vadd.f32 %v1248, %v886
        %v1257 = vadd.f32 %v1249, %v887
        %v1258 = vadd.f32 %v1250, %v888
        %v1259 = vadd.f32 %v1251, %v889
        %v1260 = vmax.f32 %v1252, 0.0
        %v1261 = vmax.f32 %v1253, 0.0
        %v1262 = vmax.f32 %v1254, 0.0
        %v1263 = vmax.f32 %v1255, 0.0
        %v1264 = vmax.f32 %v1256, 0.0
        %v1265 = vmax.f32 %v1257, 0.0
        %v1266 = vmax.f32 %v1258, 0.0
        %v1267 = vmax.f32 %v1259, 0.0
        %1268 = vst [vmem:[#allocation2 + $0x8] sm:$0xff] %v1260
        %1269 = vst [vmem:[#allocation2 + $0x10] sm:$0xff] %v1261
        %1270 = vst [vmem:[#allocation2 + $0x20] sm:$0xff] %v1262
        %1271 = vst [vmem:[#allocation2 + $0x28] sm:$0xff] %v1263
        %1272 = vst [vmem:[#allocation2 + $0x38] sm:$0xff] %v1264
        %1273 = vst [vmem:[#allocation2 + $0x40] sm:$0xff] %v1265
        %1274 = vst [vmem:[#allocation2 + $0x50] sm:$0xff] %v1266
        %1275 = vst [vmem:[#allocation2 + $0x58] sm:$0xff] %v1267
        %v1276 = vld [vmem:[#allocation2 + $0x4] sm:$0xff]
        %v1277 = vld [vmem:[#allocation2 + $0xc] sm:$0xff]
        %v1278 = vld [vmem:[#allocation2 + $0x1c] sm:$0xff]
        %v1279 = vld [vmem:[#allocation2 + $0x24] sm:$0xff]
        %v1280 = vld [vmem:[#allocation2 + $0x34] sm:$0xff]
        %v1281 = vld [vmem:[#allocation2 + $0x3c] sm:$0xff]
        %v1282 = vld [vmem:[#allocation2 + $0x4c] sm:$0xff]
        %v1283 = vld [vmem:[#allocation2 + $0x54] sm:$0xff]
        %v1284 = vld [vmem:[#allocation2 + $0x6] sm:$0xff]
        %v1285 = vld [vmem:[#allocation2 + $0xe] sm:$0xff]
        %v1286 = vld [vmem:[#allocation2 + $0x1e] sm:$0xff]
        %v1287 = vld [vmem:[#allocation2 + $0x26] sm:$0xff]
        %v1288 = vld [vmem:[#allocation2 + $0x36] sm:$0xff]
        %v1289 = vld [vmem:[#allocation2 + $0x3e] sm:$0xff]
        %v1290 = vld [vmem:[#allocation2 + $0x4e] sm:$0xff]
        %v1291 = vld [vmem:[#allocation2 + $0x56] sm:$0xff]
        %1292 = vrot.lane.b32.xlu0 %v1284, 32
        %v1293 = vpop.permute.xlu0 %1292
        %1294 = vrot.lane.b32.xlu0 %v1285, 32
        %v1295 = vpop.permute.xlu0 %1294
        %1296 = vrot.lane.b32.xlu0 %v1286, 32
        %v1297 = vpop.permute.xlu0 %1296
        %1298 = vrot.lane.b32.xlu0 %v1287, 32
        %v1299 = vpop.permute.xlu0 %1298
        %1300 = vrot.lane.b32.xlu0 %v1288, 32
        %v1301 = vpop.permute.xlu0 %1300
        %1302 = vrot.lane.b32.xlu0 %v1289, 32
        %v1303 = vpop.permute.xlu0 %1302
        %1304 = vrot.lane.b32.xlu0 %v1290, 32
        %v1305 = vpop.permute.xlu0 %1304
        %1306 = vrot.lane.b32.xlu0 %v1291, 32
        %v1307 = vpop.permute.xlu0 %1306
        %v1308 = vadd.f32 %v1276, %v1293
        %v1309 = vadd.f32 %v1277, %v1295
        %v1310 = vadd.f32 %v1278, %v1297
        %v1311 = vadd.f32 %v1279, %v1299
        %v1312 = vadd.f32 %v1280, %v1301
        %v1313 = vadd.f32 %v1281, %v1303
        %v1314 = vadd.f32 %v1282, %v1305
        %v1315 = vadd.f32 %v1283, %v1307
        %1316 = vrot.lane.b32.xlu0 %v1260, 64
        %v1317 = vpop.permute.xlu0 %1316
        %1318 = vrot.lane.b32.xlu0 %v1261, 64
        %v1319 = vpop.permute.xlu0 %1318
        %1320 = vrot.lane.b32.xlu0 %v1262, 64
        %v1321 = vpop.permute.xlu0 %1320
        %1322 = vrot.lane.b32.xlu0 %v1263, 64
        %v1323 = vpop.permute.xlu0 %1322
        %1324 = vrot.lane.b32.xlu0 %v1264, 64
        %v1325 = vpop.permute.xlu0 %1324
        %1326 = vrot.lane.b32.xlu0 %v1265, 64
        %v1327 = vpop.permute.xlu0 %1326
        %1328 = vrot.lane.b32.xlu0 %v1266, 64
        %v1329 = vpop.permute.xlu0 %1328
        %1330 = vrot.lane.b32.xlu0 %v1267, 64
        %v1331 = vpop.permute.xlu0 %1330
        %v1332 = vadd.f32 %v1308, %v1317
        %v1333 = vadd.f32 %v1309, %v1319
        %v1334 = vadd.f32 %v1310, %v1321
        %v1335 = vadd.f32 %v1311, %v1323
        %v1336 = vadd.f32 %v1312, %v1325
        %v1337 = vadd.f32 %v1313, %v1327
        %v1338 = vadd.f32 %v1314, %v1329
        %v1339 = vadd.f32 %v1315, %v1331
        %v1340 = vpack.c.bf16 %v1333, %v1332
        %v1341 = vpack.c.bf16 %v1335, %v1334
        %v1342 = vpack.c.bf16 %v1337, %v1336
        %v1343 = vpack.c.bf16 %v1339, %v1338
        %v1344 = vld [vmem:[%s7] sm:$0xf]
        %v1345 = vld [vmem:[%s7 + $0x4] sm:$0xf]
        %v1346 = vld [vmem:[%s7 + $0x8] sm:$0xf]
        %v1347 = vld [vmem:[%s7 + $0xc] sm:$0xf]
        %v1348 = vld [vmem:[%s7 + $0x10] sm:$0xf]
        %v1349 = vld [vmem:[%s7 + $0x14] sm:$0xf]
        %v1350 = vld [vmem:[%s7 + $0x18] sm:$0xf]
        %v1351 = vld [vmem:[%s7 + $0x1c] sm:$0xf]
        %v1352 = vld [vmem:[%s7 + $0x20] sm:$0xf]
        %v1353 = vld [vmem:[%s7 + $0x24] sm:$0xf]
        %v1354 = vld [vmem:[%s7 + $0x28] sm:$0xf]
        %v1355 = vld [vmem:[%s7 + $0x2c] sm:$0xf]
        %v1356 = vld [vmem:[%s7 + $0x30] sm:$0xf]
        %v1357 = vld [vmem:[%s7 + $0x34] sm:$0xf]
        %v1358 = vld [vmem:[%s7 + $0x38] sm:$0xf]
        %v1359 = vld [vmem:[%s7 + $0x3c] sm:$0xf]
        %v1360 = vld [vmem:[%s8] sm:$0x1]
        %v1362 = vperm.slane %v1360, 0
        %v1380 = vunpack.c.l.b16 %v1344
        %v1381 = vunpack.c.l.b16 %v1345
        %v1382 = vunpack.c.l.b16 %v1346
        %v1383 = vunpack.c.l.b16 %v1347
        %v1384 = vunpack.c.l.b16 %v1348
        %v1385 = vunpack.c.l.b16 %v1349
        %v1386 = vunpack.c.l.b16 %v1350
        %v1387 = vunpack.c.l.b16 %v1351
        %v1388 = vunpack.c.l.b16 %v1352
        %v1389 = vunpack.c.l.b16 %v1353
        %v1390 = vunpack.c.l.b16 %v1354
        %v1391 = vunpack.c.l.b16 %v1355
        %v1392 = vunpack.c.l.b16 %v1356
        %v1393 = vunpack.c.l.b16 %v1357
        %v1394 = vunpack.c.l.b16 %v1358
        %v1395 = vunpack.c.l.b16 %v1359
        %v1396 = vpack.c.b16 %v1381, %v1380
        %v1397 = vpack.c.b16 %v1383, %v1382
        %v1398 = vpack.c.b16 %v1385, %v1384
        %v1399 = vpack.c.b16 %v1387, %v1386
        %v1400 = vpack.c.b16 %v1389, %v1388
        %v1401 = vpack.c.b16 %v1391, %v1390
        %v1402 = vpack.c.b16 %v1393, %v1392
        %v1403 = vpack.c.b16 %v1395, %v1394
        %1412 = vmatpush.bf16.msra.mxu0 %v1403
        %1413 = vmatpush.bf16.msra.mxu0 %v1402
        %1414 = vmatpush.bf16.msra.mxu0 %v1401
        %1415 = vmatpush.bf16.msra.mxu0 %v1400
        %1416 = vmatpush.bf16.msra.mxu0 %v1399
        %1417 = vmatpush.bf16.msra.mxu0 %v1398
        %1418 = vmatpush.bf16.msra.mxu0 %v1397
        %1419 = vmatpush.bf16.msra.mxu0 %v1396
        %1420 = vmatmul.bf16.gmra.mxu0 %v1340
        %v1421 = vpop.f32.mrf.mxu0
        %v1422 = vadd.f32 %v1362, %v1421
        %v1423 = vpop.f32.mrf.mxu0
        %v1424 = vadd.f32 %v1362, %v1423
        %1425 = vmatmul.bf16.gmra.mxu0 %v1341
        %v1426 = vpop.f32.mrf.mxu0
        %v1427 = vadd.f32 %v1362, %v1426
        %v1428 = vpop.f32.mrf.mxu0
        %v1429 = vadd.f32 %v1362, %v1428
        %1430 = vmatmul.bf16.gmra.mxu0 %v1342
        %v1431 = vpop.f32.mrf.mxu0
        %v1432 = vadd.f32 %v1362, %v1431
        %v1433 = vpop.f32.mrf.mxu0
        %v1434 = vadd.f32 %v1362, %v1433
        %1435 = vmatmul.bf16.gmra.mxu0 %v1343
        %v1436 = vpop.f32.mrf.mxu0
        %v1437 = vadd.f32 %v1362, %v1436
        %v1438 = vpop.f32.mrf.mxu0
        %v1439 = vadd.f32 %v1362, %v1438
        %1440 = vdwg.mxu0
        %v1441 = vmax.f32 %v1422, 0.0
        %v1442 = vmax.f32 %v1424, 0.0
        %v1443 = vmax.f32 %v1427, 0.0
        %v1444 = vmax.f32 %v1429, 0.0
        %v1445 = vmax.f32 %v1432, 0.0
        %v1446 = vmax.f32 %v1434, 0.0
        %v1447 = vmax.f32 %v1437, 0.0
        %v1448 = vmax.f32 %v1439, 0.0
        %1449 = vst [vmem:[#allocation2 + $0x8] sm:$0xff] %v1441
        %1450 = vst [vmem:[#allocation2 + $0x10] sm:$0xff] %v1442
        %1451 = vst [vmem:[#allocation2 + $0x20] sm:$0xff] %v1443
        %1452 = vst [vmem:[#allocation2 + $0x28] sm:$0xff] %v1444
        %1453 = vst [vmem:[#allocation2 + $0x38] sm:$0xff] %v1445
        %1454 = vst [vmem:[#allocation2 + $0x40] sm:$0xff] %v1446
        %1455 = vst [vmem:[#allocation2 + $0x50] sm:$0xff] %v1447
        %1456 = vst [vmem:[#allocation2 + $0x58] sm:$0xff] %v1448
        %v1457 = vld [vmem:[#allocation2 + $0x4] sm:$0xff]
        %v1458 = vld [vmem:[#allocation2 + $0xc] sm:$0xff]
        %v1459 = vld [vmem:[#allocation2 + $0x1c] sm:$0xff]
        %v1460 = vld [vmem:[#allocation2 + $0x24] sm:$0xff]
        %v1461 = vld [vmem:[#allocation2 + $0x34] sm:$0xff]
        %v1462 = vld [vmem:[#allocation2 + $0x3c] sm:$0xff]
        %v1463 = vld [vmem:[#allocation2 + $0x4c] sm:$0xff]
        %v1464 = vld [vmem:[#allocation2 + $0x54] sm:$0xff]
        %v1465 = vld [vmem:[#allocation2 + $0x6] sm:$0xff]
        %v1466 = vld [vmem:[#allocation2 + $0xe] sm:$0xff]
        %v1467 = vld [vmem:[#allocation2 + $0x1e] sm:$0xff]
        %v1468 = vld [vmem:[#allocation2 + $0x26] sm:$0xff]
        %v1469 = vld [vmem:[#allocation2 + $0x36] sm:$0xff]
        %v1470 = vld [vmem:[#allocation2 + $0x3e] sm:$0xff]
        %v1471 = vld [vmem:[#allocation2 + $0x4e] sm:$0xff]
        %v1472 = vld [vmem:[#allocation2 + $0x56] sm:$0xff]
        %1473 = vrot.lane.b32.xlu0 %v1465, 32
        %v1474 = vpop.permute.xlu0 %1473
        %1475 = vrot.lane.b32.xlu0 %v1466, 32
        %v1476 = vpop.permute.xlu0 %1475
        %1477 = vrot.lane.b32.xlu0 %v1467, 32
        %v1478 = vpop.permute.xlu0 %1477
        %1479 = vrot.lane.b32.xlu0 %v1468, 32
        %v1480 = vpop.permute.xlu0 %1479
        %1481 = vrot.lane.b32.xlu0 %v1469, 32
        %v1482 = vpop.permute.xlu0 %1481
        %1483 = vrot.lane.b32.xlu0 %v1470, 32
        %v1484 = vpop.permute.xlu0 %1483
        %1485 = vrot.lane.b32.xlu0 %v1471, 32
        %v1486 = vpop.permute.xlu0 %1485
        %1487 = vrot.lane.b32.xlu0 %v1472, 32
        %v1488 = vpop.permute.xlu0 %1487
        %v1489 = vadd.f32 %v1457, %v1474
        %v1490 = vadd.f32 %v1458, %v1476
        %v1491 = vadd.f32 %v1459, %v1478
        %v1492 = vadd.f32 %v1460, %v1480
        %v1493 = vadd.f32 %v1461, %v1482
        %v1494 = vadd.f32 %v1462, %v1484
        %v1495 = vadd.f32 %v1463, %v1486
        %v1496 = vadd.f32 %v1464, %v1488
        %1497 = vrot.lane.b32.xlu0 %v1441, 64
        %v1498 = vpop.permute.xlu0 %1497
        %1499 = vrot.lane.b32.xlu0 %v1442, 64
        %v1500 = vpop.permute.xlu0 %1499
        %1501 = vrot.lane.b32.xlu0 %v1443, 64
        %v1502 = vpop.permute.xlu0 %1501
        %1503 = vrot.lane.b32.xlu0 %v1444, 64
        %v1504 = vpop.permute.xlu0 %1503
        %1505 = vrot.lane.b32.xlu0 %v1445, 64
        %v1506 = vpop.permute.xlu0 %1505
        %1507 = vrot.lane.b32.xlu0 %v1446, 64
        %v1508 = vpop.permute.xlu0 %1507
        %1509 = vrot.lane.b32.xlu0 %v1447, 64
        %v1510 = vpop.permute.xlu0 %1509
        %1511 = vrot.lane.b32.xlu0 %v1448, 64
        %v1512 = vpop.permute.xlu0 %1511
        %v1513 = vadd.f32 %v1489, %v1498
        %v1514 = vadd.f32 %v1490, %v1500
        %v1515 = vadd.f32 %v1491, %v1502
        %v1516 = vadd.f32 %v1492, %v1504
        %v1517 = vadd.f32 %v1493, %v1506
        %v1518 = vadd.f32 %v1494, %v1508
        %v1519 = vadd.f32 %v1495, %v1510
        %v1520 = vadd.f32 %v1496, %v1512
        %v1521 = vpack.c.bf16 %v1514, %v1513
        %v1522 = vpack.c.bf16 %v1516, %v1515
        %v1523 = vpack.c.bf16 %v1518, %v1517
        %v1524 = vpack.c.bf16 %v1520, %v1519
        %v1525 = vld [vmem:[#allocation9] sm:$0xf]
        %v1526 = vld [vmem:[#allocation9 + $0x4] sm:$0xf]
        %v1527 = vld [vmem:[#allocation9 + $0x8] sm:$0xf]
        %v1528 = vld [vmem:[#allocation9 + $0xc] sm:$0xf]
        %v1529 = vld [vmem:[#allocation9 + $0x10] sm:$0xf]
        %v1530 = vld [vmem:[#allocation9 + $0x14] sm:$0xf]
        %v1531 = vld [vmem:[#allocation9 + $0x18] sm:$0xf]
        %v1532 = vld [vmem:[#allocation9 + $0x1c] sm:$0xf]
        %v1533 = vld [vmem:[#allocation9 + $0x20] sm:$0xf]
        %v1534 = vld [vmem:[#allocation9 + $0x24] sm:$0xf]
        %v1535 = vld [vmem:[#allocation9 + $0x28] sm:$0xf]
        %v1536 = vld [vmem:[#allocation9 + $0x2c] sm:$0xf]
        %v1537 = vld [vmem:[#allocation9 + $0x30] sm:$0xf]
        %v1538 = vld [vmem:[#allocation9 + $0x34] sm:$0xf]
        %v1539 = vld [vmem:[#allocation9 + $0x38] sm:$0xf]
        %v1540 = vld [vmem:[#allocation9 + $0x3c] sm:$0xf]
        %v1541 = vld [vmem:[%s10] sm:$0x1]
        %v1543 = vperm.slane %v1541, 0
        %v1561 = vunpack.c.l.b16 %v1525
        %v1562 = vunpack.c.l.b16 %v1526
        %v1563 = vunpack.c.l.b16 %v1527
        %v1564 = vunpack.c.l.b16 %v1528
        %v1565 = vunpack.c.l.b16 %v1529
        %v1566 = vunpack.c.l.b16 %v1530
        %v1567 = vunpack.c.l.b16 %v1531
        %v1568 = vunpack.c.l.b16 %v1532
        %v1569 = vunpack.c.l.b16 %v1533
        %v1570 = vunpack.c.l.b16 %v1534
        %v1571 = vunpack.c.l.b16 %v1535
        %v1572 = vunpack.c.l.b16 %v1536
        %v1573 = vunpack.c.l.b16 %v1537
        %v1574 = vunpack.c.l.b16 %v1538
        %v1575 = vunpack.c.l.b16 %v1539
        %v1576 = vunpack.c.l.b16 %v1540
        %v1577 = vpack.c.b16 %v1562, %v1561
        %v1578 = vpack.c.b16 %v1564, %v1563
        %v1579 = vpack.c.b16 %v1566, %v1565
        %v1580 = vpack.c.b16 %v1568, %v1567
        %v1581 = vpack.c.b16 %v1570, %v1569
        %v1582 = vpack.c.b16 %v1572, %v1571
        %v1583 = vpack.c.b16 %v1574, %v1573
        %v1584 = vpack.c.b16 %v1576, %v1575
        %1593 = vmatpush.bf16.msra.mxu0 %v1584
        %1594 = vmatpush.bf16.msra.mxu0 %v1583
        %1595 = vmatpush.bf16.msra.mxu0 %v1582
        %1596 = vmatpush.bf16.msra.mxu0 %v1581
        %1597 = vmatpush.bf16.msra.mxu0 %v1580
        %1598 = vmatpush.bf16.msra.mxu0 %v1579
        %1599 = vmatpush.bf16.msra.mxu0 %v1578
        %1600 = vmatpush.bf16.msra.mxu0 %v1577
        %1601 = vmatmul.bf16.gmra.mxu0 %v1521
        %v1602 = vpop.f32.mrf.mxu0
        %v1603 = vadd.f32 %v1543, %v1602
        %v1604 = vpop.f32.mrf.mxu0
        %v1605 = vadd.f32 %v1543, %v1604
        %1606 = vmatmul.bf16.gmra.mxu0 %v1522
        %v1607 = vpop.f32.mrf.mxu0
        %v1608 = vadd.f32 %v1543, %v1607
        %v1609 = vpop.f32.mrf.mxu0
        %v1610 = vadd.f32 %v1543, %v1609
        %1611 = vmatmul.bf16.gmra.mxu0 %v1523
        %v1612 = vpop.f32.mrf.mxu0
        %v1613 = vadd.f32 %v1543, %v1612
        %v1614 = vpop.f32.mrf.mxu0
        %v1615 = vadd.f32 %v1543, %v1614
        %1616 = vmatmul.bf16.gmra.mxu0 %v1524
        %v1617 = vpop.f32.mrf.mxu0
        %v1618 = vadd.f32 %v1543, %v1617
        %v1619 = vpop.f32.mrf.mxu0
        %v1620 = vadd.f32 %v1543, %v1619
        %1621 = vdwg.mxu0
        %v1622 = vmax.f32 %v1603, 0.0
        %v1623 = vmax.f32 %v1605, 0.0
        %v1624 = vmax.f32 %v1608, 0.0
        %v1625 = vmax.f32 %v1610, 0.0
        %v1626 = vmax.f32 %v1613, 0.0
        %v1627 = vmax.f32 %v1615, 0.0
        %v1628 = vmax.f32 %v1618, 0.0
        %v1629 = vmax.f32 %v1620, 0.0
        %v1630 = vadd.f32 %v1622, %v1260
        %v1631 = vadd.f32 %v1623, %v1261
        %v1632 = vadd.f32 %v1624, %v1262
        %v1633 = vadd.f32 %v1625, %v1263
        %v1634 = vadd.f32 %v1626, %v1264
        %v1635 = vadd.f32 %v1627, %v1265
        %v1636 = vadd.f32 %v1628, %v1266
        %v1637 = vadd.f32 %v1629, %v1267
        %v1638 = vmax.f32 %v1630, 0.0
        %v1639 = vmax.f32 %v1631, 0.0
        %v1640 = vmax.f32 %v1632, 0.0
        %v1641 = vmax.f32 %v1633, 0.0
        %v1642 = vmax.f32 %v1634, 0.0
        %v1643 = vmax.f32 %v1635, 0.0
        %v1644 = vmax.f32 %v1636, 0.0
        %v1645 = vmax.f32 %v1637, 0.0
        %1646 = vst [vmem:[#allocation2 + $0x8] sm:$0xff] %v1638
        %1647 = vst [vmem:[#allocation2 + $0x10] sm:$0xff] %v1639
        %1648 = vst [vmem:[#allocation2 + $0x20] sm:$0xff] %v1640
        %1649 = vst [vmem:[#allocation2 + $0x28] sm:$0xff] %v1641
        %1650 = vst [vmem:[#allocation2 + $0x38] sm:$0xff] %v1642
        %1651 = vst [vmem:[#allocation2 + $0x40] sm:$0xff] %v1643
        %1652 = vst [vmem:[#allocation2 + $0x50] sm:$0xff] %v1644
        %1653 = vst [vmem:[#allocation2 + $0x58] sm:$0xff] %v1645
        %v1654 = vld [vmem:[#allocation2] sm:$0xff]
        %v1655 = vld [vmem:[#allocation2 + $0x8] sm:$0xff]
        %v1656 = vld [vmem:[#allocation2 + $0x18] sm:$0xff]
        %v1657 = vld [vmem:[#allocation2 + $0x20] sm:$0xff]
        %v1658 = vld [vmem:[#allocation2 + $0x30] sm:$0xff]
        %v1659 = vld [vmem:[#allocation2 + $0x38] sm:$0xff]
        %v1660 = vld [vmem:[#allocation2 + $0x48] sm:$0xff]
        %v1661 = vld [vmem:[#allocation2 + $0x50] sm:$0xff]
        %v1662 = vld [vmem:[#allocation2 + $0x4] sm:$0xff]
        %v1663 = vld [vmem:[#allocation2 + $0xc] sm:$0xff]
        %v1664 = vld [vmem:[#allocation2 + $0x1c] sm:$0xff]
        %v1665 = vld [vmem:[#allocation2 + $0x24] sm:$0xff]
        %v1666 = vld [vmem:[#allocation2 + $0x34] sm:$0xff]
        %v1667 = vld [vmem:[#allocation2 + $0x3c] sm:$0xff]
        %v1668 = vld [vmem:[#allocation2 + $0x4c] sm:$0xff]
        %v1669 = vld [vmem:[#allocation2 + $0x54] sm:$0xff]
        %1670 = vrot.lane.b32.xlu0 %v1662, 32
        %v1671 = vpop.permute.xlu0 %1670
        %1672 = vrot.lane.b32.xlu0 %v1663, 32
        %v1673 = vpop.permute.xlu0 %1672
        %1674 = vrot.lane.b32.xlu0 %v1664, 32
        %v1675 = vpop.permute.xlu0 %1674
        %1676 = vrot.lane.b32.xlu0 %v1665, 32
        %v1677 = vpop.permute.xlu0 %1676
        %1678 = vrot.lane.b32.xlu0 %v1666, 32
        %v1679 = vpop.permute.xlu0 %1678
        %1680 = vrot.lane.b32.xlu0 %v1667, 32
        %v1681 = vpop.permute.xlu0 %1680
        %1682 = vrot.lane.b32.xlu0 %v1668, 32
        %v1683 = vpop.permute.xlu0 %1682
        %1684 = vrot.lane.b32.xlu0 %v1669, 32
        %v1685 = vpop.permute.xlu0 %1684
        %v1686 = vadd.f32 %v1654, %v1671
        %v1687 = vadd.f32 %v1655, %v1673
        %v1688 = vadd.f32 %v1656, %v1675
        %v1689 = vadd.f32 %v1657, %v1677
        %v1690 = vadd.f32 %v1658, %v1679
        %v1691 = vadd.f32 %v1659, %v1681
        %v1692 = vadd.f32 %v1660, %v1683
        %v1693 = vadd.f32 %v1661, %v1685
        %1694 = vrot.lane.b32.xlu0 %v1638, 64
        %v1695 = vpop.permute.xlu0 %1694
        %1696 = vrot.lane.b32.xlu0 %v1639, 64
        %v1697 = vpop.permute.xlu0 %1696
        %1698 = vrot.lane.b32.xlu0 %v1640, 64
        %v1699 = vpop.permute.xlu0 %1698
        %1700 = vrot.lane.b32.xlu0 %v1641, 64
        %v1701 = vpop.permute.xlu0 %1700
        %1702 = vrot.lane.b32.xlu0 %v1642, 64
        %v1703 = vpop.permute.xlu0 %1702
        %1704 = vrot.lane.b32.xlu0 %v1643, 64
        %v1705 = vpop.permute.xlu0 %1704
        %1706 = vrot.lane.b32.xlu0 %v1644, 64
        %v1707 = vpop.permute.xlu0 %1706
        %1708 = vrot.lane.b32.xlu0 %v1645, 64
        %v1709 = vpop.permute.xlu0 %1708
        %v1710 = vadd.f32 %v1686, %v1695
        %v1711 = vadd.f32 %v1687, %v1697
        %v1712 = vadd.f32 %v1688, %v1699
        %v1713 = vadd.f32 %v1689, %v1701
        %v1714 = vadd.f32 %v1690, %v1703
        %v1715 = vadd.f32 %v1691, %v1705
        %v1716 = vadd.f32 %v1692, %v1707
        %v1717 = vadd.f32 %v1693, %v1709
        %v1718 = vpack.c.bf16 %v1711, %v1710
        %v1719 = vpack.c.bf16 %v1713, %v1712
        %v1720 = vpack.c.bf16 %v1715, %v1714
        %v1721 = vpack.c.bf16 %v1717, %v1716
        %v1722 = vld [vmem:[#allocation11] sm:$0xf]
        %v1723 = vld [vmem:[#allocation11 + $0x4] sm:$0xf]
        %v1724 = vld [vmem:[#allocation11 + $0x8] sm:$0xf]
        %v1725 = vld [vmem:[#allocation11 + $0xc] sm:$0xf]
        %v1726 = vld [vmem:[#allocation11 + $0x10] sm:$0xf]
        %v1727 = vld [vmem:[#allocation11 + $0x14] sm:$0xf]
        %v1728 = vld [vmem:[#allocation11 + $0x18] sm:$0xf]
        %v1729 = vld [vmem:[#allocation11 + $0x1c] sm:$0xf]
        %v1730 = vld [vmem:[#allocation11 + $0x20] sm:$0xf]
        %v1731 = vld [vmem:[#allocation11 + $0x24] sm:$0xf]
        %v1732 = vld [vmem:[#allocation11 + $0x28] sm:$0xf]
        %v1733 = vld [vmem:[#allocation11 + $0x2c] sm:$0xf]
        %v1734 = vld [vmem:[#allocation11 + $0x30] sm:$0xf]
        %v1735 = vld [vmem:[#allocation11 + $0x34] sm:$0xf]
        %v1736 = vld [vmem:[#allocation11 + $0x38] sm:$0xf]
        %v1737 = vld [vmem:[#allocation11 + $0x3c] sm:$0xf]
        %v1738 = vld [vmem:[%s12] sm:$0x1]
        %v1740 = vperm.slane %v1738, 0
        %v1758 = vunpack.c.l.b16 %v1722
        %v1759 = vunpack.c.l.b16 %v1723
        %v1760 = vunpack.c.l.b16 %v1724
        %v1761 = vunpack.c.l.b16 %v1725
        %v1762 = vunpack.c.l.b16 %v1726
        %v1763 = vunpack.c.l.b16 %v1727
        %v1764 = vunpack.c.l.b16 %v1728
        %v1765 = vunpack.c.l.b16 %v1729
        %v1766 = vunpack.c.l.b16 %v1730
        %v1767 = vunpack.c.l.b16 %v1731
        %v1768 = vunpack.c.l.b16 %v1732
        %v1769 = vunpack.c.l.b16 %v1733
        %v1770 = vunpack.c.l.b16 %v1734
        %v1771 = vunpack.c.l.b16 %v1735
        %v1772 = vunpack.c.l.b16 %v1736
        %v1773 = vunpack.c.l.b16 %v1737
        %v1774 = vpack.c.b16 %v1759, %v1758
        %v1775 = vpack.c.b16 %v1761, %v1760
        %v1776 = vpack.c.b16 %v1763, %v1762
        %v1777 = vpack.c.b16 %v1765, %v1764
        %v1778 = vpack.c.b16 %v1767, %v1766
        %v1779 = vpack.c.b16 %v1769, %v1768
        %v1780 = vpack.c.b16 %v1771, %v1770
        %v1781 = vpack.c.b16 %v1773, %v1772
        %1790 = vmatpush.bf16.msra.mxu0 %v1781
        %1791 = vmatpush.bf16.msra.mxu0 %v1780
        %1792 = vmatpush.bf16.msra.mxu0 %v1779
        %1793 = vmatpush.bf16.msra.mxu0 %v1778
        %1794 = vmatpush.bf16.msra.mxu0 %v1777
        %1795 = vmatpush.bf16.msra.mxu0 %v1776
        %1796 = vmatpush.bf16.msra.mxu0 %v1775
        %1797 = vmatpush.bf16.msra.mxu0 %v1774
        %1798 = vmatmul.bf16.gmra.mxu0 %v1718
        %v1799 = vpop.f32.mrf.mxu0
        %v1800 = vadd.f32 %v1740, %v1799
        %v1801 = vpop.f32.mrf.mxu0
        %v1802 = vadd.f32 %v1740, %v1801
        %1803 = vmatmul.bf16.gmra.mxu0 %v1719
        %v1804 = vpop.f32.mrf.mxu0
        %v1805 = vadd.f32 %v1740, %v1804
        %v1806 = vpop.f32.mrf.mxu0
        %v1807 = vadd.f32 %v1740, %v1806
        %1808 = vmatmul.bf16.gmra.mxu0 %v1720
        %v1809 = vpop.f32.mrf.mxu0
        %v1810 = vadd.f32 %v1740, %v1809
        %v1811 = vpop.f32.mrf.mxu0
        %v1812 = vadd.f32 %v1740, %v1811
        %1813 = vmatmul.bf16.gmra.mxu0 %v1721
        %v1814 = vpop.f32.mrf.mxu0
        %v1815 = vadd.f32 %v1740, %v1814
        %v1816 = vpop.f32.mrf.mxu0
        %v1817 = vadd.f32 %v1740, %v1816
        %1818 = vdwg.mxu0
        %v1819 = vmax.f32 %v1800, 0.0
        %v1820 = vmax.f32 %v1802, 0.0
        %v1821 = vmax.f32 %v1805, 0.0
        %v1822 = vmax.f32 %v1807, 0.0
        %v1823 = vmax.f32 %v1810, 0.0
        %v1824 = vmax.f32 %v1812, 0.0
        %v1825 = vmax.f32 %v1815, 0.0
        %v1826 = vmax.f32 %v1817, 0.0
        %v1827 = vpack.c.bf16 %v1639, %v1638
        %v1828 = vpack.c.bf16 %v1641, %v1640
        %v1829 = vpack.c.bf16 %v1643, %v1642
        %v1830 = vpack.c.bf16 %v1645, %v1644
        %v1831 = vld [vmem:[#allocation14] sm:$0xf]
        %v1832 = vld [vmem:[#allocation14 + $0x4] sm:$0xf]
        %v1833 = vld [vmem:[#allocation14 + $0x8] sm:$0xf]
        %v1834 = vld [vmem:[#allocation14 + $0xc] sm:$0xf]
        %v1835 = vld [vmem:[#allocation14 + $0x10] sm:$0xf]
        %v1836 = vld [vmem:[#allocation14 + $0x14] sm:$0xf]
        %v1837 = vld [vmem:[#allocation14 + $0x18] sm:$0xf]
        %v1838 = vld [vmem:[#allocation14 + $0x1c] sm:$0xf]
        %v1839 = vld [vmem:[#allocation14 + $0x20] sm:$0xf]
        %v1840 = vld [vmem:[#allocation14 + $0x24] sm:$0xf]
        %v1841 = vld [vmem:[#allocation14 + $0x28] sm:$0xf]
        %v1842 = vld [vmem:[#allocation14 + $0x2c] sm:$0xf]
        %v1843 = vld [vmem:[#allocation14 + $0x30] sm:$0xf]
        %v1844 = vld [vmem:[#allocation14 + $0x34] sm:$0xf]
        %v1845 = vld [vmem:[#allocation14 + $0x38] sm:$0xf]
        %v1846 = vld [vmem:[#allocation14 + $0x3c] sm:$0xf]
        %v1847 = vld [vmem:[%s16] sm:$0x1]
        %v1849 = vperm.slane %v1847, 0
        %v1867 = vunpack.c.l.b16 %v1831
        %v1868 = vunpack.c.l.b16 %v1832
        %v1869 = vunpack.c.l.b16 %v1833
        %v1870 = vunpack.c.l.b16 %v1834
        %v1871 = vunpack.c.l.b16 %v1835
        %v1872 = vunpack.c.l.b16 %v1836
        %v1873 = vunpack.c.l.b16 %v1837
        %v1874 = vunpack.c.l.b16 %v1838
        %v1875 = vunpack.c.l.b16 %v1839
        %v1876 = vunpack.c.l.b16 %v1840
        %v1877 = vunpack.c.l.b16 %v1841
        %v1878 = vunpack.c.l.b16 %v1842
        %v1879 = vunpack.c.l.b16 %v1843
        %v1880 = vunpack.c.l.b16 %v1844
        %v1881 = vunpack.c.l.b16 %v1845
        %v1882 = vunpack.c.l.b16 %v1846
        %v1883 = vpack.c.b16 %v1868, %v1867
        %v1884 = vpack.c.b16 %v1870, %v1869
        %v1885 = vpack.c.b16 %v1872, %v1871
        %v1886 = vpack.c.b16 %v1874, %v1873
        %v1887 = vpack.c.b16 %v1876, %v1875
        %v1888 = vpack.c.b16 %v1878, %v1877
        %v1889 = vpack.c.b16 %v1880, %v1879
        %v1890 = vpack.c.b16 %v1882, %v1881
        %1899 = vmatpush.bf16.msra.mxu0 %v1890
        %1900 = vmatpush.bf16.msra.mxu0 %v1889
        %1901 = vmatpush.bf16.msra.mxu0 %v1888
        %1902 = vmatpush.bf16.msra.mxu0 %v1887
        %1903 = vmatpush.bf16.msra.mxu0 %v1886
        %1904 = vmatpush.bf16.msra.mxu0 %v1885
        %1905 = vmatpush.bf16.msra.mxu0 %v1884
        %1906 = vmatpush.bf16.msra.mxu0 %v1883
        %1907 = vmatmul.bf16.gmra.mxu0 %v1827
        %v1908 = vpop.f32.mrf.mxu0
        %v1909 = vadd.f32 %v1849, %v1908
        %v1910 = vpop.f32.mrf.mxu0
        %v1911 = vadd.f32 %v1849, %v1910
        %1912 = vmatmul.bf16.gmra.mxu0 %v1828
        %v1913 = vpop.f32.mrf.mxu0
        %v1914 = vadd.f32 %v1849, %v1913
        %v1915 = vpop.f32.mrf.mxu0
        %v1916 = vadd.f32 %v1849, %v1915
        %1917 = vmatmul.bf16.gmra.mxu0 %v1829
        %v1918 = vpop.f32.mrf.mxu0
        %v1919 = vadd.f32 %v1849, %v1918
        %v1920 = vpop.f32.mrf.mxu0
        %v1921 = vadd.f32 %v1849, %v1920
        %1922 = vmatmul.bf16.gmra.mxu0 %v1830
        %v1923 = vpop.f32.mrf.mxu0
        %v1924 = vadd.f32 %v1849, %v1923
        %v1925 = vpop.f32.mrf.mxu0
        %v1926 = vadd.f32 %v1849, %v1925
        %1927 = vdwg.mxu0
        %1928 = vst [vmem:[#allocation2 + $0x8] sm:$0xff] %v1819
        %1929 = vst [vmem:[#allocation2 + $0x10] sm:$0xff] %v1820
        %1930 = vst [vmem:[#allocation2 + $0x20] sm:$0xff] %v1821
        %1931 = vst [vmem:[#allocation2 + $0x28] sm:$0xff] %v1822
        %1932 = vst [vmem:[#allocation2 + $0x38] sm:$0xff] %v1823
        %1933 = vst [vmem:[#allocation2 + $0x40] sm:$0xff] %v1824
        %1934 = vst [vmem:[#allocation2 + $0x50] sm:$0xff] %v1825
        %1935 = vst [vmem:[#allocation2 + $0x58] sm:$0xff] %v1826
        %v1936 = vld [vmem:[#allocation2] sm:$0xff]
        %v1937 = vld [vmem:[#allocation2 + $0x8] sm:$0xff]
        %v1938 = vld [vmem:[#allocation2 + $0x18] sm:$0xff]
        %v1939 = vld [vmem:[#allocation2 + $0x20] sm:$0xff]
        %v1940 = vld [vmem:[#allocation2 + $0x30] sm:$0xff]
        %v1941 = vld [vmem:[#allocation2 + $0x38] sm:$0xff]
        %v1942 = vld [vmem:[#allocation2 + $0x48] sm:$0xff]
        %v1943 = vld [vmem:[#allocation2 + $0x50] sm:$0xff]
        %v1944 = vld [vmem:[#allocation2 + $0x4] sm:$0xff]
        %v1945 = vld [vmem:[#allocation2 + $0xc] sm:$0xff]
        %v1946 = vld [vmem:[#allocation2 + $0x1c] sm:$0xff]
        %v1947 = vld [vmem:[#allocation2 + $0x24] sm:$0xff]
        %v1948 = vld [vmem:[#allocation2 + $0x34] sm:$0xff]
        %v1949 = vld [vmem:[#allocation2 + $0x3c] sm:$0xff]
        %v1950 = vld [vmem:[#allocation2 + $0x4c] sm:$0xff]
        %v1951 = vld [vmem:[#allocation2 + $0x54] sm:$0xff]
        %1952 = vrot.lane.b32.xlu0 %v1944, 16
        %v1953 = vpop.permute.xlu0 %1952
        %1954 = vrot.lane.b32.xlu0 %v1945, 16
        %v1955 = vpop.permute.xlu0 %1954
        %1956 = vrot.lane.b32.xlu0 %v1946, 16
        %v1957 = vpop.permute.xlu0 %1956
        %1958 = vrot.lane.b32.xlu0 %v1947, 16
        %v1959 = vpop.permute.xlu0 %1958
        %1960 = vrot.lane.b32.xlu0 %v1948, 16
        %v1961 = vpop.permute.xlu0 %1960
        %1962 = vrot.lane.b32.xlu0 %v1949, 16
        %v1963 = vpop.permute.xlu0 %1962
        %1964 = vrot.lane.b32.xlu0 %v1950, 16
        %v1965 = vpop.permute.xlu0 %1964
        %1966 = vrot.lane.b32.xlu0 %v1951, 16
        %v1967 = vpop.permute.xlu0 %1966
        %v1968 = vadd.f32 %v1936, %v1953
        %v1969 = vadd.f32 %v1937, %v1955
        %v1970 = vadd.f32 %v1938, %v1957
        %v1971 = vadd.f32 %v1939, %v1959
        %v1972 = vadd.f32 %v1940, %v1961
        %v1973 = vadd.f32 %v1941, %v1963
        %v1974 = vadd.f32 %v1942, %v1965
        %v1975 = vadd.f32 %v1943, %v1967
        %1976 = vrot.lane.b32.xlu0 %v1819, 32
        %v1977 = vpop.permute.xlu0 %1976
        %1978 = vrot.lane.b32.xlu0 %v1820, 32
        %v1979 = vpop.permute.xlu0 %1978
        %1980 = vrot.lane.b32.xlu0 %v1821, 32
        %v1981 = vpop.permute.xlu0 %1980
        %1982 = vrot.lane.b32.xlu0 %v1822, 32
        %v1983 = vpop.permute.xlu0 %1982
        %1984 = vrot.lane.b32.xlu0 %v1823, 32
        %v1985 = vpop.permute.xlu0 %1984
        %1986 = vrot.lane.b32.xlu0 %v1824, 32
        %v1987 = vpop.permute.xlu0 %1986
        %1988 = vrot.lane.b32.xlu0 %v1825, 32
        %v1989 = vpop.permute.xlu0 %1988
        %1990 = vrot.lane.b32.xlu0 %v1826, 32
        %v1991 = vpop.permute.xlu0 %1990
        %v1992 = vadd.f32 %v1968, %v1977
        %v1993 = vadd.f32 %v1969, %v1979
        %v1994 = vadd.f32 %v1970, %v1981
        %v1995 = vadd.f32 %v1971, %v1983
        %v1996 = vadd.f32 %v1972, %v1985
        %v1997 = vadd.f32 %v1973, %v1987
        %v1998 = vadd.f32 %v1974, %v1989
        %v1999 = vadd.f32 %v1975, %v1991
        %v2000 = vpack.c.bf16 %v1993, %v1992
        %v2001 = vpack.c.bf16 %v1995, %v1994
        %v2002 = vpack.c.bf16 %v1997, %v1996
        %v2003 = vpack.c.bf16 %v1999, %v1998
        %v2004 = vld [vmem:[#allocation12] sm:$0xf]
        %v2005 = vld [vmem:[#allocation12 + $0x4] sm:$0xf]
        %v2006 = vld [vmem:[#allocation12 + $0x8] sm:$0xf]
        %v2007 = vld [vmem:[#allocation12 + $0xc] sm:$0xf]
        %v2008 = vld [vmem:[#allocation12 + $0x10] sm:$0xf]
        %v2009 = vld [vmem:[#allocation12 + $0x14] sm:$0xf]
        %v2010 = vld [vmem:[#allocation12 + $0x18] sm:$0xf]
        %v2011 = vld [vmem:[#allocation12 + $0x1c] sm:$0xf]
        %v2012 = vld [vmem:[#allocation12 + $0x20] sm:$0xf]
        %v2013 = vld [vmem:[#allocation12 + $0x24] sm:$0xf]
        %v2014 = vld [vmem:[#allocation12 + $0x28] sm:$0xf]
        %v2015 = vld [vmem:[#allocation12 + $0x2c] sm:$0xf]
        %v2016 = vld [vmem:[#allocation12 + $0x30] sm:$0xf]
        %v2017 = vld [vmem:[#allocation12 + $0x34] sm:$0xf]
        %v2018 = vld [vmem:[#allocation12 + $0x38] sm:$0xf]
        %v2019 = vld [vmem:[#allocation12 + $0x3c] sm:$0xf]
        %v2020 = vld [vmem:[%s14] sm:$0x1]
        %v2022 = vperm.slane %v2020, 0
        %v2040 = vunpack.c.l.b16 %v2004
        %v2041 = vunpack.c.l.b16 %v2005
        %v2042 = vunpack.c.l.b16 %v2006
        %v2043 = vunpack.c.l.b16 %v2007
        %v2044 = vunpack.c.l.b16 %v2008
        %v2045 = vunpack.c.l.b16 %v2009
        %v2046 = vunpack.c.l.b16 %v2010
        %v2047 = vunpack.c.l.b16 %v2011
        %v2048 = vunpack.c.l.b16 %v2012
        %v2049 = vunpack.c.l.b16 %v2013
        %v2050 = vunpack.c.l.b16 %v2014
        %v2051 = vunpack.c.l.b16 %v2015
        %v2052 = vunpack.c.l.b16 %v2016
        %v2053 = vunpack.c.l.b16 %v2017
        %v2054 = vunpack.c.l.b16 %v2018
        %v2055 = vunpack.c.l.b16 %v2019
        %v2056 = vpack.c.b16 %v2041, %v2040
        %v2057 = vpack.c.b16 %v2043, %v2042
        %v2058 = vpack.c.b16 %v2045, %v2044
        %v2059 = vpack.c.b16 %v2047, %v2046
        %v2060 = vpack.c.b16 %v2049, %v2048
        %v2061 = vpack.c.b16 %v2051, %v2050
        %v2062 = vpack.c.b16 %v2053, %v2052
        %v2063 = vpack.c.b16 %v2055, %v2054
        %2072 = vmatpush.bf16.msra.mxu0 %v2063
        %2073 = vmatpush.bf16.msra.mxu0 %v2062
        %2074 = vmatpush.bf16.msra.mxu0 %v2061
        %2075 = vmatpush.bf16.msra.mxu0 %v2060
        %2076 = vmatpush.bf16.msra.mxu0 %v2059
        %2077 = vmatpush.bf16.msra.mxu0 %v2058
        %2078 = vmatpush.bf16.msra.mxu0 %v2057
        %2079 = vmatpush.bf16.msra.mxu0 %v2056
        %2080 = vmatmul.bf16.gmra.mxu0 %v2000
        %v2081 = vpop.f32.mrf.mxu0
        %v2082 = vadd.f32 %v2022, %v2081
        %v2083 = vpop.f32.mrf.mxu0
        %v2084 = vadd.f32 %v2022, %v2083
        %2085 = vmatmul.bf16.gmra.mxu0 %v2001
        %v2086 = vpop.f32.mrf.mxu0
        %v2087 = vadd.f32 %v2022, %v2086
        %v2088 = vpop.f32.mrf.mxu0
        %v2089 = vadd.f32 %v2022, %v2088
        %2090 = vmatmul.bf16.gmra.mxu0 %v2002
        %v2091 = vpop.f32.mrf.mxu0
        %v2092 = vadd.f32 %v2022, %v2091
        %v2093 = vpop.f32.mrf.mxu0
        %v2094 = vadd.f32 %v2022, %v2093
        %2095 = vmatmul.bf16.gmra.mxu0 %v2003
        %v2096 = vpop.f32.mrf.mxu0
        %v2097 = vadd.f32 %v2022, %v2096
        %v2098 = vpop.f32.mrf.mxu0
        %v2099 = vadd.f32 %v2022, %v2098
        %2100 = vdwg.mxu0
        %v2101 = vmax.f32 %v2082, 0.0
        %v2102 = vmax.f32 %v2084, 0.0
        %v2103 = vmax.f32 %v2087, 0.0
        %v2104 = vmax.f32 %v2089, 0.0
        %v2105 = vmax.f32 %v2092, 0.0
        %v2106 = vmax.f32 %v2094, 0.0
        %v2107 = vmax.f32 %v2097, 0.0
        %v2108 = vmax.f32 %v2099, 0.0
        %v2109 = vadd.f32 %v2101, %v1909
        %v2110 = vadd.f32 %v2102, %v1911
        %v2111 = vadd.f32 %v2103, %v1914
        %v2112 = vadd.f32 %v2104, %v1916
        %v2113 = vadd.f32 %v2105, %v1919
        %v2114 = vadd.f32 %v2106, %v1921
        %v2115 = vadd.f32 %v2107, %v1924
        %v2116 = vadd.f32 %v2108, %v1926
        %v2117 = vmax.f32 %v2109, 0.0
        %v2118 = vmax.f32 %v2110, 0.0
        %v2119 = vmax.f32 %v2111, 0.0
        %v2120 = vmax.f32 %v2112, 0.0
        %v2121 = vmax.f32 %v2113, 0.0
        %v2122 = vmax.f32 %v2114, 0.0
        %v2123 = vmax.f32 %v2115, 0.0
        %v2124 = vmax.f32 %v2116, 0.0
        %v2125 = vpack.c.bf16 %v2118, %v2117
        %v2126 = vpack.c.bf16 %v2120, %v2119
        %v2127 = vpack.c.bf16 %v2122, %v2121
        %v2128 = vpack.c.bf16 %v2124, %v2123
        %v2129 = vld [vmem:[#allocation15] sm:$0xf]
        %v2130 = vld [vmem:[#allocation15 + $0x4] sm:$0xf]
        %v2131 = vld [vmem:[#allocation15 + $0x8] sm:$0xf]
        %v2132 = vld [vmem:[#allocation15 + $0xc] sm:$0xf]
        %v2133 = vld [vmem:[#allocation15 + $0x10] sm:$0xf]
        %v2134 = vld [vmem:[#allocation15 + $0x14] sm:$0xf]
        %v2135 = vld [vmem:[#allocation15 + $0x18] sm:$0xf]
        %v2136 = vld [vmem:[#allocation15 + $0x1c] sm:$0xf]
        %v2137 = vld [vmem:[#allocation15 + $0x20] sm:$0xf]
        %v2138 = vld [vmem:[#allocation15 + $0x24] sm:$0xf]
        %v2139 = vld [vmem:[#allocation15 + $0x28] sm:$0xf]
        %v2140 = vld [vmem:[#allocation15 + $0x2c] sm:$0xf]
        %v2141 = vld [vmem:[#allocation15 + $0x30] sm:$0xf]
        %v2142 = vld [vmem:[#allocation15 + $0x34] sm:$0xf]
        %v2143 = vld [vmem:[#allocation15 + $0x38] sm:$0xf]
        %v2144 = vld [vmem:[#allocation15 + $0x3c] sm:$0xf]
        %v2145 = vld [vmem:[%s18] sm:$0x1]
        %v2147 = vperm.slane %v2145, 0
        %v2165 = vunpack.c.l.b16 %v2129
        %v2166 = vunpack.c.l.b16 %v2130
        %v2167 = vunpack.c.l.b16 %v2131
        %v2168 = vunpack.c.l.b16 %v2132
        %v2169 = vunpack.c.l.b16 %v2133
        %v2170 = vunpack.c.l.b16 %v2134
        %v2171 = vunpack.c.l.b16 %v2135
        %v2172 = vunpack.c.l.b16 %v2136
        %v2173 = vunpack.c.l.b16 %v2137
        %v2174 = vunpack.c.l.b16 %v2138
        %v2175 = vunpack.c.l.b16 %v2139
        %v2176 = vunpack.c.l.b16 %v2140
        %v2177 = vunpack.c.l.b16 %v2141
        %v2178 = vunpack.c.l.b16 %v2142
        %v2179 = vunpack.c.l.b16 %v2143
        %v2180 = vunpack.c.l.b16 %v2144
        %v2181 = vpack.c.b16 %v2166, %v2165
        %v2182 = vpack.c.b16 %v2168, %v2167
        %v2183 = vpack.c.b16 %v2170, %v2169
        %v2184 = vpack.c.b16 %v2172, %v2171
        %v2185 = vpack.c.b16 %v2174, %v2173
        %v2186 = vpack.c.b16 %v2176, %v2175
        %v2187 = vpack.c.b16 %v2178, %v2177
        %v2188 = vpack.c.b16 %v2180, %v2179
        %2197 = vmatpush.bf16.msra.mxu0 %v2188
        %2198 = vmatpush.bf16.msra.mxu0 %v2187
        %2199 = vmatpush.bf16.msra.mxu0 %v2186
        %2200 = vmatpush.bf16.msra.mxu0 %v2185
        %2201 = vmatpush.bf16.msra.mxu0 %v2184
        %2202 = vmatpush.bf16.msra.mxu0 %v2183
        %2203 = vmatpush.bf16.msra.mxu0 %v2182
        %2204 = vmatpush.bf16.msra.mxu0 %v2181
        %2205 = vmatmul.bf16.gmra.mxu0 %v2125
        %v2206 = vpop.f32.mrf.mxu0
        %v2207 = vadd.f32 %v2147, %v2206
        %v2208 = vpop.f32.mrf.mxu0
        %v2209 = vadd.f32 %v2147, %v2208
        %2210 = vmatmul.bf16.gmra.mxu0 %v2126
        %v2211 = vpop.f32.mrf.mxu0
        %v2212 = vadd.f32 %v2147, %v2211
        %v2213 = vpop.f32.mrf.mxu0
        %v2214 = vadd.f32 %v2147, %v2213
        %2215 = vmatmul.bf16.gmra.mxu0 %v2127
        %v2216 = vpop.f32.mrf.mxu0
        %v2217 = vadd.f32 %v2147, %v2216
        %v2218 = vpop.f32.mrf.mxu0
        %v2219 = vadd.f32 %v2147, %v2218
        %2220 = vmatmul.bf16.gmra.mxu0 %v2128
        %v2221 = vpop.f32.mrf.mxu0
        %v2222 = vadd.f32 %v2147, %v2221
        %v2223 = vpop.f32.mrf.mxu0
        %v2224 = vadd.f32 %v2147, %v2223
        %2225 = vdwg.mxu0
        %2226 = vst [vmem:[%s725] sm:$0xff] %v2207
        %2227 = vst [vmem:[%s725 + $0x8] sm:$0xff] %v2209
        %2228 = vst [vmem:[%s725 + $0x10] sm:$0xff] %v2212
        %2229 = vst [vmem:[%s725 + $0x18] sm:$0xff] %v2214
        %2230 = vst [vmem:[%s725 + $0x20] sm:$0xff] %v2217
        %2231 = vst [vmem:[%s725 + $0x28] sm:$0xff] %v2219
        %2232 = vst [vmem:[%s725 + $0x30] sm:$0xff] %v2222
        %2233 = vst [vmem:[%s725 + $0x38] sm:$0xff] %v2224
        %s2234 = sand.u32 %s450, 1
        %s2235 = scalar_lea.sflag [#allocation5], %s2234
        %s2236 = sand.u32 %s450, 1
        %s2237 = smul.addr %s2236, 64
        %s2238 = scalar_lea.vmem [#allocation17], %s2237
        // Predicated region
        $region129: #{forward.1} parent=95 // pred_check
          %p2239 = pneg %p460
        $region130: #{forward.1} parent=95 // pred_check_branch
          %2241 = sbr.rel (%p2239) target = $region132
        $region131: #{forward.1} parent=95 // pred_region
          %s2242 = smul.u32 4, %s38
          %2244 = vsyncadd %s2235, 0
          %s2245 = smul.addr %s2242, 2
          %s2246 = smul.addr %s2245, 8
          %s2247 = scalar_lea.hbm %s19, %s2246
          %s2248 = sshll.u32 %s2238, 4
          %s2249 = int_to_ptr.vmem [resolvable:$true] %s2248
          %s2250 = sshll.u32 %s2247, 4
          %s2251 = int_to_ptr.hbm [resolvable:$true] %s2250
          %2256 = dma.vmem_to_hbm [thread:$0]  %s2249, 1024, %s2251, %s2235, 128, 128, 8
        $region132: #{forward.1} parent=95 // pred_fallthru
          _
      $region96: #{forward.1} parent=5 // pred_fallthru
        _
      %p2257 = scmp.le.s32.totalorder 2, %s33
      // Predicated region
      $region133: #{forward.1} parent=5 // pred_check
        %p2258 = pneg %p2257
      $region134: #{forward.1} parent=5 // pred_check_branch
        %2260 = sbr.rel (%p2258) target = $region136
      $region135: #{forward.1} parent=5 // pred_region
        %s2261 = ssub.s32 %s33, 2
        // Predicated region
        $region137: #{forward.1} parent=135 // pred_check
          %p2262 = pneg %p466
        $region138: #{forward.1} parent=135 // pred_check_branch
          %2264 = sbr.rel (%p2262) target = $region140
        $region139: #{forward.1} parent=135 // pred_region
          %s2265 = sand.u32 %s451, 1
          %s2266 = scalar_lea.sflag [#allocation5], %s2265
          %s2267 = sand.u32 %s451, 1
          %s2268 = smul.addr %s2267, 64
          %s2269 = scalar_lea.vmem [#allocation17], %s2268
          %2271 = dma.done %s2266, 1024
        $region140: #{forward.1} parent=135 // pred_fallthru
          _
      $region136: #{forward.1} parent=5 // pred_fallthru
        _
    $region6: #{forward.1} parent=1 // loop_footer
      %s37 = sadd.s32 1, %s33
    $region7: #{forward.1} parent=1 // loop_footer_branch
      %32 = sbr.rel target = $region3
    $region8: #{forward.1} parent=1 // loop_exit
      _
    %2272 = vsyncpa [#allocation4], 1
    %s2273 = scalar_lea.sflag [#allocation4], 1
    %2274 = vsyncpa %s2273, 1
    %2275 = vsyncpa [#allocation7], 1
    %2276 = vsyncpa [#allocation10], 1
    %2277 = vsyncpa [#allocation13], 1
    %2278 = vsyncpa [#allocation16], 1
    %2279 = vsyncpa [#allocation5], 1
    %s2280 = scalar_lea.sflag [#allocation5], 1
    %2281 = vsyncpa %s2280, 1

</llo_original>
